<compile_context>
chip_gen: v7x
topology: tpu7x:2x2x1
jax: 0.10.0
libtpu: 0.0.40
codegen_flags: <defaults>
</compile_context>

<pallas_src>
import functools
import math

import jax
import jax.numpy as jnp
from jax.experimental import pallas as pl
from jax.experimental.pallas import tpu as pltpu


def _interp_matrix(n_out, n_in):
    """Row-stochastic (n_out, n_in) bilinear interpolation matrix, align_corners=True."""
    if n_in == 1:
        return jnp.ones((n_out, 1), jnp.float32)
    src = jnp.arange(n_out, dtype=jnp.float32) * (n_in - 1) / (n_out - 1)
    i0 = jnp.clip(jnp.floor(src).astype(jnp.int32), 0, n_in - 2)
    i1 = i0 + 1
    w1 = src - i0.astype(jnp.float32)
    oh0 = jax.nn.one_hot(i0, n_in, dtype=jnp.float32)
    oh1 = jax.nn.one_hot(i1, n_in, dtype=jnp.float32)
    return (1.0 - w1)[:, None] * oh0 + w1[:, None] * oh1


def _up_double_conv_kernel(x1_ref, x2p_ref, upT_ref, mask_ref,
                           w1_ref, b1_ref, w2_ref, b2_ref,
                           o_ref, xpad1, patch1, xpad2, patch2,
                           *, C1, C2, Ho, Wo, Wp):
    """Fused: upsample(x1) + pad(x2) + concat + (conv3x3+BN+ReLU) x 2, per batch elem.

    Flattened layout: padded images live as (C, (Ho+2)*Wp + 2) rows with row stride Wp;
    im2col rows / conv outputs have length L = Ho*Wp (columns >= Wo in each image row
    are junk; they are masked to zero after conv1 and trimmed in the wrapper).
    """
    Cin = C1 + C2
    Cmid = w1_ref.shape[0]
    L = Ho * Wp
    padlen = xpad1.shape[1]

    # ---- conv1 input: lane-dense copy of the wrapper-pre-padded x2, plus the bilinear
    #      x2-upsample of x1 written straight into the halo layout by one bf16 matmul.
    xpad1[0:C2, :] = x2p_ref[0]
    up = jnp.dot(x1_ref[0], upT_ref[...], preferred_element_type=jnp.float32)
    xpad1[C2:Cin, :] = up.astype(jnp.bfloat16)

    # ---- conv1: single im2col matmul (K = 9*Cin); BN scale is pre-folded into w1. ---
    for tap in range(9):
        dy, dx = tap // 3, tap % 3
        t0 = dy * Wp + dx
        patch1[tap * Cin:(tap + 1) * Cin, :] = xpad1[:, t0:t0 + L]
    y1 = jnp.dot(w1_ref[...], patch1[...], preferred_element_type=jnp.float32)
    y1 = jnp.maximum(y1 + b1_ref[...], 0.0) * mask_ref[...]

    # ---- conv2: re-pad via a shifted copy; only the tiny halo slabs are zeroed. -----
    xpad2[:, 0:Wp + 1] = jnp.zeros((Cmid, Wp + 1), jnp.bfloat16)
    xpad2[:, Wp + 1 + L:padlen] = jnp.zeros((Cmid, padlen - Wp - 1 - L), jnp.bfloat16)
    xpad2[:, Wp + 1:Wp + 1 + L] = y1.astype(jnp.bfloat16)
    for tap in range(9):
        dy, dx = tap // 3, tap % 3
        t0 = dy * Wp + dx
        patch2[tap * Cmid:(tap + 1) * Cmid, :] = xpad2[:, t0:t0 + L]
    y2 = jnp.dot(w2_ref[...], patch2[...], preferred_element_type=jnp.float32)

    # Lane-dense store (L is a multiple of 128); junk columns trimmed in the wrapper.
    o_ref[0] = jnp.maximum(y2 + b2_ref[...], 0.0).astype(o_ref.dtype)


def up_forward(params, x1_nchw, x2_nchw):
    """Forward pass of Up (NCHW in / NCHW out, matching the PyTorch module)."""
    N, C1, H1, W1 = x1_nchw.shape
    N2, C2, H2, W2 = x2_nchw.shape
    assert N == N2
    Ho, Wo = 2 * H1, 2 * W1
    Hp = Ho + 2
    Cin = C1 + C2
    Cmid = params["w1"].shape[0]
    Cout = params["w2"].shape[0]
    assert params["w1"].shape == (Cmid, 9 * Cin)
    assert params["w2"].shape == (Cout, 9 * Cmid)

    # Padded row stride: >= Wo + 2 (1-px conv halo each side); round up so L = Ho*Wp is
    # a multiple of 128 (unmasked lane-dense stores) when the extra columns are cheap.
    Wp = Wo + 2
    step = 128 // math.gcd(Ho, 128)
    Wp_aligned = ((Wp + step - 1) // step) * step
    if Wp_aligned - Wp <= max(8, Wo // 4):
        Wp = Wp_aligned
    L = Ho * Wp
    img = Hp * Wp
    padlen = img + 2          # +2 so the last im2col tap slice stays in bounds

    # Replicate the reference F.pad exactly, including its documented X/Y swap
    # (harmless for square inputs): diffX is the height diff but pads width, etc.
    diffX = Ho - H2
    diffY = Wo - W2
    pad_w_l, pad_w_r = diffX // 2, int(diffX / 2)
    pad_h_t, pad_h_b = diffY // 2, int(diffY / 2)
    assert diffX >= 0 and diffY >= 0, "cropping (negative diff) not supported"
    assert H2 + pad_h_t + pad_h_b == Ho and W2 + pad_w_l + pad_w_r == Wo

    # Pre-pad x2 (F.pad + 1-px conv halo + row-stride padding) in one cheap XLA pad and
    # flatten to the kernel's halo layout, so the kernel does one lane-dense copy.
    x2_pad = jnp.pad(
        x2_nchw,
        ((0, 0), (0, 0),
         (1 + pad_h_t, Hp - 1 - pad_h_t - H2),
         (1 + pad_w_l, Wp - 1 - pad_w_l - W2)),
    ).reshape(N, C2, img)
    x2_pad = jnp.pad(x2_pad, ((0, 0), (0, 0), (0, padlen - img))).astype(jnp.bfloat16)

    # Bilinear x2 upsample operator (align_corners=True), embedded into the halo-padded
    # flattened layout so the kernel deposits it (halo zeros included) with one matmul.
    M = jnp.kron(_interp_matrix(Ho, H1), _interp_matrix(Wo, W1))     # (Ho*Wo, H1*W1)
    Mpad = jnp.pad(M.reshape(Ho, Wo, H1 * W1),
                   ((1, 1), (1, Wp - Wo - 1), (0, 0)))               # (Hp, Wp, H1*W1)
    upT = jnp.pad(Mpad.reshape(img, H1 * W1), ((0, padlen - img), (0, 0)))
    upT = upT.T.astype(jnp.bfloat16)                                  # (H1*W1, padlen)

    # Mask that zeroes the junk columns (col >= Wo) of the flattened conv1 output; the
    # masked zeros double as the conv2 halo when y1 is re-embedded with a shifted copy.
    col = jnp.arange(L) % Wp
    mask = (col < Wo).astype(jnp.float32).reshape(1, L)

    # Fold the BN scale into the bf16 weights so the in-kernel epilogue is +bias, ReLU.
    w1 = (params["scale1"][:, None] * params["w1"]).astype(jnp.bfloat16)
    w2 = (params["scale2"][:, None] * params["w2"]).astype(jnp.bfloat16)
    b1 = params["bias1"].reshape(Cmid, 1).astype(jnp.float32)
    b2 = params["bias2"].reshape(Cout, 1).astype(jnp.float32)

    x1_flat = x1_nchw.reshape(N, C1, H1 * W1).astype(jnp.bfloat16)    # free reshape

    kernel = functools.partial(_up_double_conv_kernel,
                               C1=C1, C2=C2, Ho=Ho, Wo=Wo, Wp=Wp)

    out = pl.pallas_call(
        kernel,
        out_shape=jax.ShapeDtypeStruct((N, Cout, L), x1_nchw.dtype),
        grid=(N,),
        in_specs=[
            pl.BlockSpec((1, C1, H1 * W1), lambda n: (n, 0, 0)),
            pl.BlockSpec((1, C2, padlen), lambda n: (n, 0, 0)),
            pl.BlockSpec((H1 * W1, padlen), lambda n: (0, 0)),
            pl.BlockSpec((1, L), lambda n: (0, 0)),
            pl.BlockSpec((Cmid, 9 * Cin), lambda n: (0, 0)),
            pl.BlockSpec((Cmid, 1), lambda n: (0, 0)),
            pl.BlockSpec((Cout, 9 * Cmid), lambda n: (0, 0)),
            pl.BlockSpec((Cout, 1), lambda n: (0, 0)),
        ],
        out_specs=pl.BlockSpec((1, Cout, L), lambda n: (n, 0, 0)),
        scratch_shapes=[
            pltpu.VMEM((Cin, padlen), jnp.bfloat16),    # padded concat conv1 input
            pltpu.VMEM((9 * Cin, L), jnp.bfloat16),     # im2col patch, conv1
            pltpu.VMEM((Cmid, padlen), jnp.bfloat16),   # padded mid activation
            pltpu.VMEM((9 * Cmid, L), jnp.bfloat16),    # im2col patch, conv2
        ],
        compiler_params=pltpu.CompilerParams(dimension_semantics=("parallel",)),
    )(x1_flat, x2_pad, upT, mask, w1, b1, w2, b2)

    # Drop the junk columns per row and recover NCHW (tiny slice on the output only).
    return out.reshape(N, Cout, Ho, Wp)[:, :, :, :Wo]


def fold_conv_bn(w_oihw, conv_b, gamma, beta, running_mean=None, running_var=None,
                 eps=1e-5):
    """PyTorch Conv2d weight (O,I,3,3) -> im2col layout (O, 9*I); fold the following
    inference-mode BatchNorm (and the conv bias) into a per-channel scale/bias."""
    out_ch, in_ch = w_oihw.shape[0], w_oihw.shape[1]
    w = jnp.transpose(w_oihw, (0, 2, 3, 1)).reshape(out_ch, 9 * in_ch)
    if running_mean is None:
        running_mean = jnp.zeros((out_ch,), jnp.float32)
    if running_var is None:
        running_var = jnp.ones((out_ch,), jnp.float32)
    scale = gamma / jnp.sqrt(running_var + eps)
    bias = (conv_b - running_mean) * scale + beta
    return w, scale, bias


def _reference_up(x1, x2, w1_oihw, b1, g1, be1, w2_oihw, b2, g2, be2, eps=1e-5):
    """Pure-JAX f32 reference replicating the PyTorch Up.forward (inference-mode BN)."""
    _, _, H1, W1 = x1.shape
    Ho, Wo = 2 * H1, 2 * W1
    uh = _interp_matrix(Ho, H1)
    uw = _interp_matrix(Wo, W1)
    x1u = jnp.einsum("ph,nchw->ncpw", uh, x1)
    x1u = jnp.einsum("qw,ncpw->ncpq", uw, x1u)
    diffX = x1u.shape[2] - x2.shape[2]
    diffY = x1u.shape[3] - x2.shape[3]
    x2p = jnp.pad(x2, ((0, 0), (0, 0),
                       (diffY // 2, int(diffY / 2)),
                       (diffX // 2, int(diffX / 2))))
    x = jnp.concatenate([x2p, x1u], axis=1)

    def conv_bn_relu(x, w, b, g, be):
        y = jax.lax.conv_general_dilated(
            x, w, window_strides=(1, 1), padding="SAME",
            dimension_numbers=("NCHW", "OIHW", "NCHW"),
            precision=jax.lax.Precision.HIGHEST)
        y = y + b[None, :, None, None]
        scale = g / jnp.sqrt(1.0 + eps)
        y = y * scale[None, :, None, None] + be[None, :, None, None]
        return jnp.maximum(y, 0.0)

    x = conv_bn_relu(x, w1_oihw, b1, g1, be1)
    x = conv_bn_relu(x, w2_oihw, b2, g2, be2)
    return x


if __name__ == "__main__":
    key = jax.random.PRNGKey(0)
    (k_x1, k_x2, k_w1, k_b1, k_g1, k_be1,
     k_w2, k_b2, k_g2, k_be2) = jax.random.split(key, 10)

    # Up(in_ch=8, out_ch=4, bilinear=True); x1 is half-resolution with in_ch//2 channels.
    in_ch, out_ch, N = 8, 4, 2
    x1 = jax.random.normal(k_x1, (N, in_ch // 2, 8, 8), jnp.float32)     # NCHW
    x2 = jax.random.normal(k_x2, (N, in_ch // 2, 16, 16), jnp.float32)   # NCHW

    # Deterministic synthetic parameters (PyTorch shapes), then fold BN.
    w1_oihw = 0.1 * jax.random.normal(k_w1, (out_ch, in_ch, 3, 3), jnp.float32)
    b1 = 0.1 * jax.random.normal(k_b1, (out_ch,), jnp.float32)
    g1 = 1.0 + 0.1 * jax.random.normal(k_g1, (out_ch,), jnp.float32)
    be1 = 0.1 * jax.random.normal(k_be1, (out_ch,), jnp.float32)

    w2_oihw = 0.1 * jax.random.normal(k_w2, (out_ch, out_ch, 3, 3), jnp.float32)
    b2 = 0.1 * jax.random.normal(k_b2, (out_ch,), jnp.float32)
    g2 = 1.0 + 0.1 * jax.random.normal(k_g2, (out_ch,), jnp.float32)
    be2 = 0.1 * jax.random.normal(k_be2, (out_ch,), jnp.float32)

    w1, s1, bb1 = fold_conv_bn(w1_oihw, b1, g1, be1)
    w2, s2, bb2 = fold_conv_bn(w2_oihw, b2, g2, be2)
    params = dict(w1=w1, scale1=s1, bias1=bb1, w2=w2, scale2=s2, bias2=bb2)

    y = jax.jit(up_forward)(params, x1, x2)
    jax.block_until_ready(y)
    assert y.shape == (N, out_ch, 16, 16), y.shape

    # Loose-tolerance check against a pure-JAX f32 reference (kernel matmuls are bf16).
    y_ref = _reference_up(x1, x2, w1_oihw, b1, g1, be1, w2_oihw, b2, g2, be2)
    err = float(jnp.max(jnp.abs(y - y_ref)))
    assert err < 0.15, f"max abs error vs reference: {err}"
    print("KERNEL_OK")
</pallas_src>

<mosaic_0001>
module attributes {stable_mosaic.version = 11 : i64} {
  func.func @_up_double_conv_kernel(%arg0: i32, %arg1: memref<1x4x64xbf16, #tpu.memory_space<vmem>>, %arg2: memref<1x4x434xbf16, #tpu.memory_space<vmem>>, %arg3: memref<64x434xbf16, #tpu.memory_space<vmem>>, %arg4: memref<1x384xf32, #tpu.memory_space<vmem>>, %arg5: memref<4x72xbf16, #tpu.memory_space<vmem>>, %arg6: memref<4x1xf32, #tpu.memory_space<vmem>>, %arg7: memref<4x36xbf16, #tpu.memory_space<vmem>>, %arg8: memref<4x1xf32, #tpu.memory_space<vmem>>, %arg9: memref<1x4x384xf32, #tpu.memory_space<vmem>>, %arg10: memref<8x434xbf16, #tpu.memory_space<vmem>>, %arg11: memref<72x384xbf16, #tpu.memory_space<vmem>>, %arg12: memref<4x434xbf16, #tpu.memory_space<vmem>>, %arg13: memref<36x384xbf16, #tpu.memory_space<vmem>>) attributes {dimension_semantics = [#tpu.dimension_semantics<parallel>], iteration_bounds = array<i64: 2>, scalar_prefetch = 0 : i64, scratch_operands = 4 : i64, tpu.core_type = #tpu.core_type<tc>, window_params = [{transform_indices = @transform_0, window_bounds = array<i64: 1, 4, 64>}, {transform_indices = @transform_1, window_bounds = array<i64: 1, 4, 434>}, {pipeline_mode = #tpu.pipeline_mode<synchronous>, transform_indices = @transform_2, window_bounds = array<i64: 64, 434>}, {pipeline_mode = #tpu.pipeline_mode<synchronous>, transform_indices = @transform_3, window_bounds = array<i64: 1, 384>}, {pipeline_mode = #tpu.pipeline_mode<synchronous>, transform_indices = @transform_4, window_bounds = array<i64: 4, 72>}, {pipeline_mode = #tpu.pipeline_mode<synchronous>, transform_indices = @transform_5, window_bounds = array<i64: 4, 1>}, {pipeline_mode = #tpu.pipeline_mode<synchronous>, transform_indices = @transform_6, window_bounds = array<i64: 4, 36>}, {pipeline_mode = #tpu.pipeline_mode<synchronous>, transform_indices = @transform_7, window_bounds = array<i64: 4, 1>}, {transform_indices = @transform_8, window_bounds = array<i64: 1, 4, 384>}]} {
    %c0 = arith.constant 0 : index
    %c0_0 = arith.constant 0 : index
    %c0_1 = arith.constant 0 : index
    %0 = vector.load %arg2[%c0, %c0_0, %c0_1] : memref<1x4x434xbf16, #tpu.memory_space<vmem>>, vector<1x4x434xbf16>
    %1 = vector.shape_cast %0 : vector<1x4x434xbf16> to vector<4x434xbf16>
    %c0_2 = arith.constant 0 : index
    %c0_3 = arith.constant 0 : index
    %2 = vector.load %arg10[%c0_2, %c0_3] : memref<8x434xbf16, #tpu.memory_space<vmem>>, vector<4x434xbf16>
    tpu.vector_store %arg10[%c0_2, %c0_3], %1 {strides = array<i32>} : memref<8x434xbf16, #tpu.memory_space<vmem>>, vector<4x434xbf16>,
    %c0_4 = arith.constant 0 : index
    %c0_5 = arith.constant 0 : index
    %c0_6 = arith.constant 0 : index
    %3 = vector.load %arg1[%c0_4, %c0_5, %c0_6] : memref<1x4x64xbf16, #tpu.memory_space<vmem>>, vector<1x4x64xbf16>
    %4 = vector.shape_cast %3 : vector<1x4x64xbf16> to vector<4x64xbf16>
    %c0_7 = arith.constant 0 : index
    %c0_8 = arith.constant 0 : index
    %5 = vector.load %arg3[%c0_7, %c0_8] : memref<64x434xbf16, #tpu.memory_space<vmem>>, vector<64x434xbf16>
    %cst = arith.constant dense<0.000000e+00> : vector<4x434xf32>
    %6 = tpu.matmul %4, %5, %cst {dimension_numbers = #tpu.dot_dimension_numbers<[1], [0], [0], [1], [0, 0, 1, 1], [], []>} : vector<4x64xbf16>, vector<64x434xbf16>, vector<4x434xf32> -> vector<4x434xf32>
    %7 = arith.truncf %6 : vector<4x434xf32> to vector<4x434xbf16>
    %c4 = arith.constant 4 : index
    %c0_9 = arith.constant 0 : index
    %8 = vector.load %arg10[%c4, %c0_9] : memref<8x434xbf16, #tpu.memory_space<vmem>>, vector<4x434xbf16>
    tpu.vector_store %arg10[%c4, %c0_9], %7 {strides = array<i32>} : memref<8x434xbf16, #tpu.memory_space<vmem>>, vector<4x434xbf16>,
    %c0_10 = arith.constant 0 : index
    %c0_11 = arith.constant 0 : index
    %9 = vector.load %arg10[%c0_10, %c0_11] : memref<8x434xbf16, #tpu.memory_space<vmem>>, vector<8x384xbf16>
    %c0_12 = arith.constant 0 : index
    %c0_13 = arith.constant 0 : index
    %10 = vector.load %arg11[%c0_12, %c0_13] : memref<72x384xbf16, #tpu.memory_space<vmem>>, vector<8x384xbf16>
    tpu.vector_store %arg11[%c0_12, %c0_13], %9 {strides = array<i32>} : memref<72x384xbf16, #tpu.memory_space<vmem>>, vector<8x384xbf16>,
    %c0_14 = arith.constant 0 : index
    %c1 = arith.constant 1 : index
    %11 = vector.load %arg10[%c0_14, %c1] : memref<8x434xbf16, #tpu.memory_space<vmem>>, vector<8x384xbf16>
    %c8 = arith.constant 8 : index
    %c0_15 = arith.constant 0 : index
    %12 = vector.load %arg11[%c8, %c0_15] : memref<72x384xbf16, #tpu.memory_space<vmem>>, vector<8x384xbf16>
    tpu.vector_store %arg11[%c8, %c0_15], %11 {strides = array<i32>} : memref<72x384xbf16, #tpu.memory_space<vmem>>, vector<8x384xbf16>,
    %c0_16 = arith.constant 0 : index
    %c2 = arith.constant 2 : index
    %13 = vector.load %arg10[%c0_16, %c2] : memref<8x434xbf16, #tpu.memory_space<vmem>>, vector<8x384xbf16>
    %c16 = arith.constant 16 : index
    %c0_17 = arith.constant 0 : index
    %14 = vector.load %arg11[%c16, %c0_17] : memref<72x384xbf16, #tpu.memory_space<vmem>>, vector<8x384xbf16>
    tpu.vector_store %arg11[%c16, %c0_17], %13 {strides = array<i32>} : memref<72x384xbf16, #tpu.memory_space<vmem>>, vector<8x384xbf16>,
    %c0_18 = arith.constant 0 : index
    %c24 = arith.constant 24 : index
    %15 = vector.load %arg10[%c0_18, %c24] : memref<8x434xbf16, #tpu.memory_space<vmem>>, vector<8x384xbf16>
    %c24_19 = arith.constant 24 : index
    %c0_20 = arith.constant 0 : index
    %16 = vector.load %arg11[%c24_19, %c0_20] : memref<72x384xbf16, #tpu.memory_space<vmem>>, vector<8x384xbf16>
    tpu.vector_store %arg11[%c24_19, %c0_20], %15 {strides = array<i32>} : memref<72x384xbf16, #tpu.memory_space<vmem>>, vector<8x384xbf16>,
    %c0_21 = arith.constant 0 : index
    %c25 = arith.constant 25 : index
    %17 = vector.load %arg10[%c0_21, %c25] : memref<8x434xbf16, #tpu.memory_space<vmem>>, vector<8x384xbf16>
    %c32 = arith.constant 32 : index
    %c0_22 = arith.constant 0 : index
    %18 = vector.load %arg11[%c32, %c0_22] : memref<72x384xbf16, #tpu.memory_space<vmem>>, vector<8x384xbf16>
    tpu.vector_store %arg11[%c32, %c0_22], %17 {strides = array<i32>} : memref<72x384xbf16, #tpu.memory_space<vmem>>, vector<8x384xbf16>,
    %c0_23 = arith.constant 0 : index
    %c26 = arith.constant 26 : index
    %19 = vector.load %arg10[%c0_23, %c26] : memref<8x434xbf16, #tpu.memory_space<vmem>>, vector<8x384xbf16>
    %c40 = arith.constant 40 : index
    %c0_24 = arith.constant 0 : index
    %20 = vector.load %arg11[%c40, %c0_24] : memref<72x384xbf16, #tpu.memory_space<vmem>>, vector<8x384xbf16>
    tpu.vector_store %arg11[%c40, %c0_24], %19 {strides = array<i32>} : memref<72x384xbf16, #tpu.memory_space<vmem>>, vector<8x384xbf16>,
    %c0_25 = arith.constant 0 : index
    %c48 = arith.constant 48 : index
    %21 = vector.load %arg10[%c0_25, %c48] : memref<8x434xbf16, #tpu.memory_space<vmem>>, vector<8x384xbf16>
    %c48_26 = arith.constant 48 : index
    %c0_27 = arith.constant 0 : index
    %22 = vector.load %arg11[%c48_26, %c0_27] : memref<72x384xbf16, #tpu.memory_space<vmem>>, vector<8x384xbf16>
    tpu.vector_store %arg11[%c48_26, %c0_27], %21 {strides = array<i32>} : memref<72x384xbf16, #tpu.memory_space<vmem>>, vector<8x384xbf16>,
    %c0_28 = arith.constant 0 : index
    %c49 = arith.constant 49 : index
    %23 = vector.load %arg10[%c0_28, %c49] : memref<8x434xbf16, #tpu.memory_space<vmem>>, vector<8x384xbf16>
    %c56 = arith.constant 56 : index
    %c0_29 = arith.constant 0 : index
    %24 = vector.load %arg11[%c56, %c0_29] : memref<72x384xbf16, #tpu.memory_space<vmem>>, vector<8x384xbf16>
    tpu.vector_store %arg11[%c56, %c0_29], %23 {strides = array<i32>} : memref<72x384xbf16, #tpu.memory_space<vmem>>, vector<8x384xbf16>,
    %c0_30 = arith.constant 0 : index
    %c50 = arith.constant 50 : index
    %25 = vector.load %arg10[%c0_30, %c50] : memref<8x434xbf16, #tpu.memory_space<vmem>>, vector<8x384xbf16>
    %c64 = arith.constant 64 : index
    %c0_31 = arith.constant 0 : index
    %26 = vector.load %arg11[%c64, %c0_31] : memref<72x384xbf16, #tpu.memory_space<vmem>>, vector<8x384xbf16>
    tpu.vector_store %arg11[%c64, %c0_31], %25 {strides = array<i32>} : memref<72x384xbf16, #tpu.memory_space<vmem>>, vector<8x384xbf16>,
    %c0_32 = arith.constant 0 : index
    %c0_33 = arith.constant 0 : index
    %27 = vector.load %arg5[%c0_32, %c0_33] : memref<4x72xbf16, #tpu.memory_space<vmem>>, vector<4x72xbf16>
    %c0_34 = arith.constant 0 : index
    %c0_35 = arith.constant 0 : index
    %28 = vector.load %arg11[%c0_34, %c0_35] : memref<72x384xbf16, #tpu.memory_space<vmem>>, vector<72x384xbf16>
    %cst_36 = arith.constant dense<0.000000e+00> : vector<4x384xf32>
    %29 = tpu.matmul %27, %28, %cst_36 {dimension_numbers = #tpu.dot_dimension_numbers<[1], [0], [0], [1], [0, 0, 1, 1], [], []>} : vector<4x72xbf16>, vector<72x384xbf16>, vector<4x384xf32> -> vector<4x384xf32>
    %c0_37 = arith.constant 0 : index
    %c0_38 = arith.constant 0 : index
    %30 = vector.load %arg6[%c0_37, %c0_38] : memref<4x1xf32, #tpu.memory_space<vmem>>, vector<4x1xf32>
    %31 = vector.broadcast %30 : vector<4x1xf32> to vector<4x384xf32>
    %32 = arith.addf %29, %31 : vector<4x384xf32>
    %cst_39 = arith.constant 0.000000e+00 : f32
    %33 = vector.broadcast %cst_39 : f32 to vector<4x384xf32>
    %34 = arith.maximumf %32, %33 : vector<4x384xf32>
    %c0_40 = arith.constant 0 : index
    %c0_41 = arith.constant 0 : index
    %35 = vector.load %arg4[%c0_40, %c0_41] : memref<1x384xf32, #tpu.memory_space<vmem>>, vector<1x384xf32>
    %36 = vector.broadcast %35 : vector<1x384xf32> to vector<4x384xf32>
    %37 = arith.mulf %34, %36 : vector<4x384xf32>
    %cst_42 = arith.constant 0.000000e+00 : bf16
    %38 = vector.broadcast %cst_42 : bf16 to vector<4x25xbf16>
    %c0_43 = arith.constant 0 : index
    %c0_44 = arith.constant 0 : index
    %39 = vector.load %arg12[%c0_43, %c0_44] : memref<4x434xbf16, #tpu.memory_space<vmem>>, vector<4x25xbf16>
    tpu.vector_store %arg12[%c0_43, %c0_44], %38 {strides = array<i32>} : memref<4x434xbf16, #tpu.memory_space<vmem>>, vector<4x25xbf16>,
    %cst_45 = arith.constant 0.000000e+00 : bf16
    %40 = vector.broadcast %cst_45 : bf16 to vector<4x25xbf16>
    %c0_46 = arith.constant 0 : index
    %c409 = arith.constant 409 : index
    %41 = vector.load %arg12[%c0_46, %c409] : memref<4x434xbf16, #tpu.memory_space<vmem>>, vector<4x25xbf16>
    tpu.vector_store %arg12[%c0_46, %c409], %40 {strides = array<i32>} : memref<4x434xbf16, #tpu.memory_space<vmem>>, vector<4x25xbf16>,
    %42 = arith.truncf %37 : vector<4x384xf32> to vector<4x384xbf16>
    %c0_47 = arith.constant 0 : index
    %c25_48 = arith.constant 25 : index
    %43 = vector.load %arg12[%c0_47, %c25_48] : memref<4x434xbf16, #tpu.memory_space<vmem>>, vector<4x384xbf16>
    tpu.vector_store %arg12[%c0_47, %c25_48], %42 {strides = array<i32>} : memref<4x434xbf16, #tpu.memory_space<vmem>>, vector<4x384xbf16>,
    %c0_49 = arith.constant 0 : index
    %c0_50 = arith.constant 0 : index
    %44 = vector.load %arg12[%c0_49, %c0_50] : memref<4x434xbf16, #tpu.memory_space<vmem>>, vector<4x384xbf16>
    %c0_51 = arith.constant 0 : index
    %c0_52 = arith.constant 0 : index
    %45 = vector.load %arg13[%c0_51, %c0_52] : memref<36x384xbf16, #tpu.memory_space<vmem>>, vector<4x384xbf16>
    tpu.vector_store %arg13[%c0_51, %c0_52], %44 {strides = array<i32>} : memref<36x384xbf16, #tpu.memory_space<vmem>>, vector<4x384xbf16>,
    %c0_53 = arith.constant 0 : index
    %c1_54 = arith.constant 1 : index
    %46 = vector.load %arg12[%c0_53, %c1_54] : memref<4x434xbf16, #tpu.memory_space<vmem>>, vector<4x384xbf16>
    %c4_55 = arith.constant 4 : index
    %c0_56 = arith.constant 0 : index
    %47 = vector.load %arg13[%c4_55, %c0_56] : memref<36x384xbf16, #tpu.memory_space<vmem>>, vector<4x384xbf16>
    tpu.vector_store %arg13[%c4_55, %c0_56], %46 {strides = array<i32>} : memref<36x384xbf16, #tpu.memory_space<vmem>>, vector<4x384xbf16>,
    %c0_57 = arith.constant 0 : index
    %c2_58 = arith.constant 2 : index
    %48 = vector.load %arg12[%c0_57, %c2_58] : memref<4x434xbf16, #tpu.memory_space<vmem>>, vector<4x384xbf16>
    %c8_59 = arith.constant 8 : index
    %c0_60 = arith.constant 0 : index
    %49 = vector.load %arg13[%c8_59, %c0_60] : memref<36x384xbf16, #tpu.memory_space<vmem>>, vector<4x384xbf16>
    tpu.vector_store %arg13[%c8_59, %c0_60], %48 {strides = array<i32>} : memref<36x384xbf16, #tpu.memory_space<vmem>>, vector<4x384xbf16>,
    %c0_61 = arith.constant 0 : index
    %c24_62 = arith.constant 24 : index
    %50 = vector.load %arg12[%c0_61, %c24_62] : memref<4x434xbf16, #tpu.memory_space<vmem>>, vector<4x384xbf16>
    %c12 = arith.constant 12 : index
    %c0_63 = arith.constant 0 : index
    %51 = vector.load %arg13[%c12, %c0_63] : memref<36x384xbf16, #tpu.memory_space<vmem>>, vector<4x384xbf16>
    tpu.vector_store %arg13[%c12, %c0_63], %50 {strides = array<i32>} : memref<36x384xbf16, #tpu.memory_space<vmem>>, vector<4x384xbf16>,
    %c0_64 = arith.constant 0 : index
    %c25_65 = arith.constant 25 : index
    %52 = vector.load %arg12[%c0_64, %c25_65] : memref<4x434xbf16, #tpu.memory_space<vmem>>, vector<4x384xbf16>
    %c16_66 = arith.constant 16 : index
    %c0_67 = arith.constant 0 : index
    %53 = vector.load %arg13[%c16_66, %c0_67] : memref<36x384xbf16, #tpu.memory_space<vmem>>, vector<4x384xbf16>
    tpu.vector_store %arg13[%c16_66, %c0_67], %52 {strides = array<i32>} : memref<36x384xbf16, #tpu.memory_space<vmem>>, vector<4x384xbf16>,
    %c0_68 = arith.constant 0 : index
    %c26_69 = arith.constant 26 : index
    %54 = vector.load %arg12[%c0_68, %c26_69] : memref<4x434xbf16, #tpu.memory_space<vmem>>, vector<4x384xbf16>
    %c20 = arith.constant 20 : index
    %c0_70 = arith.constant 0 : index
    %55 = vector.load %arg13[%c20, %c0_70] : memref<36x384xbf16, #tpu.memory_space<vmem>>, vector<4x384xbf16>
    tpu.vector_store %arg13[%c20, %c0_70], %54 {strides = array<i32>} : memref<36x384xbf16, #tpu.memory_space<vmem>>, vector<4x384xbf16>,
    %c0_71 = arith.constant 0 : index
    %c48_72 = arith.constant 48 : index
    %56 = vector.load %arg12[%c0_71, %c48_72] : memref<4x434xbf16, #tpu.memory_space<vmem>>, vector<4x384xbf16>
    %c24_73 = arith.constant 24 : index
    %c0_74 = arith.constant 0 : index
    %57 = vector.load %arg13[%c24_73, %c0_74] : memref<36x384xbf16, #tpu.memory_space<vmem>>, vector<4x384xbf16>
    tpu.vector_store %arg13[%c24_73, %c0_74], %56 {strides = array<i32>} : memref<36x384xbf16, #tpu.memory_space<vmem>>, vector<4x384xbf16>,
    %c0_75 = arith.constant 0 : index
    %c49_76 = arith.constant 49 : index
    %58 = vector.load %arg12[%c0_75, %c49_76] : memref<4x434xbf16, #tpu.memory_space<vmem>>, vector<4x384xbf16>
    %c28 = arith.constant 28 : index
    %c0_77 = arith.constant 0 : index
    %59 = vector.load %arg13[%c28, %c0_77] : memref<36x384xbf16, #tpu.memory_space<vmem>>, vector<4x384xbf16>
    tpu.vector_store %arg13[%c28, %c0_77], %58 {strides = array<i32>} : memref<36x384xbf16, #tpu.memory_space<vmem>>, vector<4x384xbf16>,
    %c0_78 = arith.constant 0 : index
    %c50_79 = arith.constant 50 : index
    %60 = vector.load %arg12[%c0_78, %c50_79] : memref<4x434xbf16, #tpu.memory_space<vmem>>, vector<4x384xbf16>
    %c32_80 = arith.constant 32 : index
    %c0_81 = arith.constant 0 : index
    %61 = vector.load %arg13[%c32_80, %c0_81] : memref<36x384xbf16, #tpu.memory_space<vmem>>, vector<4x384xbf16>
    tpu.vector_store %arg13[%c32_80, %c0_81], %60 {strides = array<i32>} : memref<36x384xbf16, #tpu.memory_space<vmem>>, vector<4x384xbf16>,
    %c0_82 = arith.constant 0 : index
    %c0_83 = arith.constant 0 : index
    %62 = vector.load %arg7[%c0_82, %c0_83] : memref<4x36xbf16, #tpu.memory_space<vmem>>, vector<4x36xbf16>
    %c0_84 = arith.constant 0 : index
    %c0_85 = arith.constant 0 : index
    %63 = vector.load %arg13[%c0_84, %c0_85] : memref<36x384xbf16, #tpu.memory_space<vmem>>, vector<36x384xbf16>
    %cst_86 = arith.constant dense<0.000000e+00> : vector<4x384xf32>
    %64 = tpu.matmul %62, %63, %cst_86 {dimension_numbers = #tpu.dot_dimension_numbers<[1], [0], [0], [1], [0, 0, 1, 1], [], []>} : vector<4x36xbf16>, vector<36x384xbf16>, vector<4x384xf32> -> vector<4x384xf32>
    %c0_87 = arith.constant 0 : index
    %c0_88 = arith.constant 0 : index
    %65 = vector.load %arg8[%c0_87, %c0_88] : memref<4x1xf32, #tpu.memory_space<vmem>>, vector<4x1xf32>
    %66 = vector.broadcast %65 : vector<4x1xf32> to vector<4x384xf32>
    %67 = arith.addf %64, %66 : vector<4x384xf32>
    %cst_89 = arith.constant 0.000000e+00 : f32
    %68 = vector.broadcast %cst_89 : f32 to vector<4x384xf32>
    %69 = arith.maximumf %67, %68 : vector<4x384xf32>
    %c0_90 = arith.constant 0 : index
    %c0_91 = arith.constant 0 : index
    %c0_92 = arith.constant 0 : index
    %70 = vector.load %arg9[%c0_90, %c0_91, %c0_92] : memref<1x4x384xf32, #tpu.memory_space<vmem>>, vector<1x4x384xf32>
    %71 = vector.shape_cast %70 : vector<1x4x384xf32> to vector<4x384xf32>
    %72 = vector.shape_cast %69 : vector<4x384xf32> to vector<1x4x384xf32>
    tpu.vector_store %arg9[%c0_90, %c0_91, %c0_92], %72 {strides = array<i32>} : memref<1x4x384xf32, #tpu.memory_space<vmem>>, vector<1x4x384xf32>,
    return
  }
  func.func @transform_0(%arg0: i32) -> (i32, i32, i32) {
    %c0_i32 = arith.constant 0 : i32
    %c0_i32_0 = arith.constant 0 : i32
    %c0_i32_1 = arith.constant 0 : i32
    return %arg0, %c0_i32, %c0_i32_0 : i32, i32, i32
  }
  func.func @transform_1(%arg0: i32) -> (i32, i32, i32) {
    %c0_i32 = arith.constant 0 : i32
    %c0_i32_0 = arith.constant 0 : i32
    %c0_i32_1 = arith.constant 0 : i32
    return %arg0, %c0_i32, %c0_i32_0 : i32, i32, i32
  }
  func.func @transform_2(%arg0: i32) -> (i32, i32) {
    %c0_i32 = arith.constant 0 : i32
    %c0_i32_0 = arith.constant 0 : i32
    %c0_i32_1 = arith.constant 0 : i32
    return %c0_i32, %c0_i32_0 : i32, i32
  }
  func.func @transform_3(%arg0: i32) -> (i32, i32) {
    %c0_i32 = arith.constant 0 : i32
    %c0_i32_0 = arith.constant 0 : i32
    %c0_i32_1 = arith.constant 0 : i32
    return %c0_i32, %c0_i32_0 : i32, i32
  }
  func.func @transform_4(%arg0: i32) -> (i32, i32) {
    %c0_i32 = arith.constant 0 : i32
    %c0_i32_0 = arith.constant 0 : i32
    %c0_i32_1 = arith.constant 0 : i32
    return %c0_i32, %c0_i32_0 : i32, i32
  }
  func.func @transform_5(%arg0: i32) -> (i32, i32) {
    %c0_i32 = arith.constant 0 : i32
    %c0_i32_0 = arith.constant 0 : i32
    %c0_i32_1 = arith.constant 0 : i32
    return %c0_i32, %c0_i32_0 : i32, i32
  }
  func.func @transform_6(%arg0: i32) -> (i32, i32) {
    %c0_i32 = arith.constant 0 : i32
    %c0_i32_0 = arith.constant 0 : i32
    %c0_i32_1 = arith.constant 0 : i32
    return %c0_i32, %c0_i32_0 : i32, i32
  }
  func.func @transform_7(%arg0: i32) -> (i32, i32) {
    %c0_i32 = arith.constant 0 : i32
    %c0_i32_0 = arith.constant 0 : i32
    %c0_i32_1 = arith.constant 0 : i32
    return %c0_i32, %c0_i32_0 : i32, i32
  }
  func.func @transform_8(%arg0: i32) -> (i32, i32, i32) {
    %c0_i32 = arith.constant 0 : i32
    %c0_i32_0 = arith.constant 0 : i32
    %c0_i32_1 = arith.constant 0 : i32
    return %arg0, %c0_i32, %c0_i32_0 : i32, i32, i32
  }
}

</mosaic_0001>

<llo_original>
// kernel: up_forward.1
$region0: #{up_forward.1}
  #allocation0 [shape = 'u32[]', space=smem, size = 0x4, offset = 0x4, fixed_abs, tag = 'smem constant byte address 0x4 - core index']
  #allocation1 [shape = 'u32[144,128]{1,0:T(1,128)}', space=vmem, size = 0x12000, scoped, tag = 'internal scratch']
  #allocation2 [shape = 'bf16[8,434]{1,0:T(8,128)(2,1)}', space=vmem, size = 0x2000, scoped, tag = 'scratch operand']
  #allocation3 [shape = 'bf16[72,384]{1,0:T(8,128)(2,1)}', space=vmem, size = 0xd800, scoped, tag = 'scratch operand']
  #allocation4 [shape = 'bf16[4,434]{1,0:T(4,128)(2,1)}', space=vmem, size = 0x1000, scoped, tag = 'scratch operand']
  #allocation5 [shape = 'bf16[36,384]{1,0:T(8,128)(2,1)}', space=vmem, size = 0x7800, scoped, tag = 'scratch operand']
  %s0 = inlined_call_operand.vmem [shape: bf16[2,4,64], index: 0, kind: input, shape index: {}]
  %s1 = inlined_call_operand.vmem [shape: bf16[2,4,434], index: 1, kind: input, shape index: {}]
  %s2 = inlined_call_operand.vmem [shape: bf16[64,434], index: 2, kind: input, shape index: {}]
  %s3 = inlined_call_operand.vmem [shape: f32[1,384], index: 3, kind: input, shape index: {}]
  %s4 = inlined_call_operand.vmem [shape: bf16[4,72], index: 4, kind: input, shape index: {}]
  %s5 = inlined_call_operand.vmem [shape: f32[4,1], index: 5, kind: input, shape index: {}]
  %s6 = inlined_call_operand.vmem [shape: bf16[4,36], index: 6, kind: input, shape index: {}]
  %s7 = inlined_call_operand.vmem [shape: f32[4,1], index: 7, kind: input, shape index: {}]
  %s8 = inlined_call_operand.vmem [shape: f32[2,4,384], index: 8, kind: output, shape index: {}]
  %s9 = sld [smem:[#allocation0]]
  $region65: #{up_forward.1} parent=0
    _
  %s11 = ssub.s32 1, %s9
  %s12 = scalar_select 0, %s11, %s9
  loop: start=0, step=1, limit=4
  $region2: #{up_forward.1} parent=0 // loop_pre_header
    _
  $region3: #{up_forward.1} parent=0 // loop_header
    %s14 = sphi 0, %s18
    %p15 = scmp.ge.s32.totalorder %s14, 4
    %s24 = sphi 0, %s26
    %s27 = sphi 0, %s24
    %s28 = sphi 0, %s27
    %s44 = sphi 0, %s28
    %s50 = sphi 0, %s52
    %s53 = sphi 0, %s50
    %s54 = sphi 0, %s53
    %s70 = sphi 0, %s54
    %s74 = sphi 0, %s74
    %s76 = sphi 0, %s74
    %s77 = sphi 0, %s76
    %s91 = sphi 0, %s77
    %s95 = sphi 0, %s95
    %s97 = sphi 0, %s95
    %s98 = sphi 0, %s97
    %s112 = sphi 0, %s98
    %s116 = sphi 0, %s116
    %s118 = sphi 0, %s116
    %s119 = sphi 0, %s118
    %s133 = sphi 0, %s119
    %s137 = sphi 0, %s137
    %s139 = sphi 0, %s137
    %s140 = sphi 0, %s139
    %s154 = sphi 0, %s140
    %s158 = sphi 0, %s158
    %s160 = sphi 0, %s158
    %s161 = sphi 0, %s160
    %s175 = sphi 0, %s161
    %s179 = sphi 0, %s179
    %s181 = sphi 0, %s179
    %s182 = sphi 0, %s181
    %s196 = sphi 0, %s182
    %s202 = sphi 0, %s204
    %s205 = sphi 0, %s202
    %s206 = sphi 0, %s205
    %s222 = sphi 0, %s206
  $region4: #{up_forward.1} parent=0 // loop_header_branch
    %17 = sbr.rel (%p15) target = $region8
  $region5: #{up_forward.1} parent=0 // loop_body
    %s19 = ssub.s32 %s14, 1
    %s20 = ssub.s32 %s14, 2
    %s21 = sadd.s32 %s14, 1
    %s22 = ssub.s32 %s14, %s21
    %p23 = scmp.eq.s32.totalorder %s22, 0
    %s25 = sadd.s32 %s24, 1
    %s26 = scalar_select %p23, %s24, %s25
    %p29 = pneg %p23
    %p30 = scmp.eq.s32.totalorder %s14, 1
    %p31 = por %p29, %p30
    %p32 = scmp.ne.s32.totalorder %s24, %s27
    %p33 = scmp.eq.s32.totalorder %s14, 0
    %p34 = por %p32, %p33
    %p35 = scmp.ne.s32.totalorder %s24, %s27
    %p36 = scmp.eq.s32.totalorder %s19, 1
    %p37 = por %p35, %p36
    %p38 = scmp.ne.s32.totalorder %s27, %s28
    %p39 = scmp.eq.s32.totalorder %s19, 0
    %p40 = por %p38, %p39
    %p41 = scmp.ne.s32.totalorder %s27, %s28
    %p42 = scmp.eq.s32.totalorder %s20, 1
    %p43 = por %p41, %p42
    %p45 = scmp.ne.s32.totalorder %s28, %s44
    %p46 = scmp.eq.s32.totalorder %s20, 0
    %p47 = por %p45, %p46
    %s48 = ssub.s32 %s14, %s21
    %p49 = scmp.eq.s32.totalorder %s48, 0
    %s51 = sadd.s32 %s50, 1
    %s52 = scalar_select %p49, %s50, %s51
    %p55 = pneg %p49
    %p56 = scmp.eq.s32.totalorder %s14, 1
    %p57 = por %p55, %p56
    %p58 = scmp.ne.s32.totalorder %s50, %s53
    %p59 = scmp.eq.s32.totalorder %s14, 0
    %p60 = por %p58, %p59
    %p61 = scmp.ne.s32.totalorder %s50, %s53
    %p62 = scmp.eq.s32.totalorder %s19, 1
    %p63 = por %p61, %p62
    %p64 = scmp.ne.s32.totalorder %s53, %s54
    %p65 = scmp.eq.s32.totalorder %s19, 0
    %p66 = por %p64, %p65
    %p67 = scmp.ne.s32.totalorder %s53, %s54
    %p68 = scmp.eq.s32.totalorder %s20, 1
    %p69 = por %p67, %p68
    %p71 = scmp.ne.s32.totalorder %s54, %s70
    %p72 = scmp.eq.s32.totalorder %s20, 0
    %p73 = por %p71, %p72
    %s75 = sadd.s32 %s74, 1
    %p78 = scmp.eq.s32.totalorder %s14, 1
    %p79 = scmp.ne.s32.totalorder %s74, %s76
    %p80 = scmp.eq.s32.totalorder %s14, 0
    %p81 = por %p79, %p80
    %p82 = scmp.ne.s32.totalorder %s74, %s76
    %p83 = scmp.eq.s32.totalorder %s19, 1
    %p84 = por %p82, %p83
    %p85 = scmp.ne.s32.totalorder %s76, %s77
    %p86 = scmp.eq.s32.totalorder %s19, 0
    %p87 = por %p85, %p86
    %p88 = scmp.ne.s32.totalorder %s76, %s77
    %p89 = scmp.eq.s32.totalorder %s20, 1
    %p90 = por %p88, %p89
    %p92 = scmp.ne.s32.totalorder %s77, %s91
    %p93 = scmp.eq.s32.totalorder %s20, 0
    %p94 = por %p92, %p93
    %s96 = sadd.s32 %s95, 1
    %p99 = scmp.eq.s32.totalorder %s14, 1
    %p100 = scmp.ne.s32.totalorder %s95, %s97
    %p101 = scmp.eq.s32.totalorder %s14, 0
    %p102 = por %p100, %p101
    %p103 = scmp.ne.s32.totalorder %s95, %s97
    %p104 = scmp.eq.s32.totalorder %s19, 1
    %p105 = por %p103, %p104
    %p106 = scmp.ne.s32.totalorder %s97, %s98
    %p107 = scmp.eq.s32.totalorder %s19, 0
    %p108 = por %p106, %p107
    %p109 = scmp.ne.s32.totalorder %s97, %s98
    %p110 = scmp.eq.s32.totalorder %s20, 1
    %p111 = por %p109, %p110
    %p113 = scmp.ne.s32.totalorder %s98, %s112
    %p114 = scmp.eq.s32.totalorder %s20, 0
    %p115 = por %p113, %p114
    %s117 = sadd.s32 %s116, 1
    %p120 = scmp.eq.s32.totalorder %s14, 1
    %p121 = scmp.ne.s32.totalorder %s116, %s118
    %p122 = scmp.eq.s32.totalorder %s14, 0
    %p123 = por %p121, %p122
    %p124 = scmp.ne.s32.totalorder %s116, %s118
    %p125 = scmp.eq.s32.totalorder %s19, 1
    %p126 = por %p124, %p125
    %p127 = scmp.ne.s32.totalorder %s118, %s119
    %p128 = scmp.eq.s32.totalorder %s19, 0
    %p129 = por %p127, %p128
    %p130 = scmp.ne.s32.totalorder %s118, %s119
    %p131 = scmp.eq.s32.totalorder %s20, 1
    %p132 = por %p130, %p131
    %p134 = scmp.ne.s32.totalorder %s119, %s133
    %p135 = scmp.eq.s32.totalorder %s20, 0
    %p136 = por %p134, %p135
    %s138 = sadd.s32 %s137, 1
    %p141 = scmp.eq.s32.totalorder %s14, 1
    %p142 = scmp.ne.s32.totalorder %s137, %s139
    %p143 = scmp.eq.s32.totalorder %s14, 0
    %p144 = por %p142, %p143
    %p145 = scmp.ne.s32.totalorder %s137, %s139
    %p146 = scmp.eq.s32.totalorder %s19, 1
    %p147 = por %p145, %p146
    %p148 = scmp.ne.s32.totalorder %s139, %s140
    %p149 = scmp.eq.s32.totalorder %s19, 0
    %p150 = por %p148, %p149
    %p151 = scmp.ne.s32.totalorder %s139, %s140
    %p152 = scmp.eq.s32.totalorder %s20, 1
    %p153 = por %p151, %p152
    %p155 = scmp.ne.s32.totalorder %s140, %s154
    %p156 = scmp.eq.s32.totalorder %s20, 0
    %p157 = por %p155, %p156
    %s159 = sadd.s32 %s158, 1
    %p162 = scmp.eq.s32.totalorder %s14, 1
    %p163 = scmp.ne.s32.totalorder %s158, %s160
    %p164 = scmp.eq.s32.totalorder %s14, 0
    %p165 = por %p163, %p164
    %p166 = scmp.ne.s32.totalorder %s158, %s160
    %p167 = scmp.eq.s32.totalorder %s19, 1
    %p168 = por %p166, %p167
    %p169 = scmp.ne.s32.totalorder %s160, %s161
    %p170 = scmp.eq.s32.totalorder %s19, 0
    %p171 = por %p169, %p170
    %p172 = scmp.ne.s32.totalorder %s160, %s161
    %p173 = scmp.eq.s32.totalorder %s20, 1
    %p174 = por %p172, %p173
    %p176 = scmp.ne.s32.totalorder %s161, %s175
    %p177 = scmp.eq.s32.totalorder %s20, 0
    %p178 = por %p176, %p177
    %s180 = sadd.s32 %s179, 1
    %p183 = scmp.eq.s32.totalorder %s14, 1
    %p184 = scmp.ne.s32.totalorder %s179, %s181
    %p185 = scmp.eq.s32.totalorder %s14, 0
    %p186 = por %p184, %p185
    %p187 = scmp.ne.s32.totalorder %s179, %s181
    %p188 = scmp.eq.s32.totalorder %s19, 1
    %p189 = por %p187, %p188
    %p190 = scmp.ne.s32.totalorder %s181, %s182
    %p191 = scmp.eq.s32.totalorder %s19, 0
    %p192 = por %p190, %p191
    %p193 = scmp.ne.s32.totalorder %s181, %s182
    %p194 = scmp.eq.s32.totalorder %s20, 1
    %p195 = por %p193, %p194
    %p197 = scmp.ne.s32.totalorder %s182, %s196
    %p198 = scmp.eq.s32.totalorder %s20, 0
    %p199 = por %p197, %p198
    %s200 = ssub.s32 %s14, %s21
    %p201 = scmp.eq.s32.totalorder %s200, 0
    %s203 = sadd.s32 %s202, 1
    %s204 = scalar_select %p201, %s202, %s203
    %p207 = pneg %p201
    %p208 = scmp.eq.s32.totalorder %s14, 1
    %p209 = por %p207, %p208
    %p210 = scmp.ne.s32.totalorder %s202, %s205
    %p211 = scmp.eq.s32.totalorder %s14, 0
    %p212 = por %p210, %p211
    %p213 = scmp.ne.s32.totalorder %s202, %s205
    %p214 = scmp.eq.s32.totalorder %s19, 1
    %p215 = por %p213, %p214
    %p216 = scmp.ne.s32.totalorder %s205, %s206
    %p217 = scmp.eq.s32.totalorder %s19, 0
    %p218 = por %p216, %p217
    %p219 = scmp.ne.s32.totalorder %s205, %s206
    %p220 = scmp.eq.s32.totalorder %s20, 1
    %p221 = por %p219, %p220
    %p223 = scmp.ne.s32.totalorder %s206, %s222
    %p224 = scmp.eq.s32.totalorder %s20, 0
    %p225 = por %p223, %p224
    %p226 = scmp.le.s32.totalorder 1, %s14
    %p227 = scmp.lt.s32.totalorder %s14, 3
    %p228 = pnand %p226, %p227
    %p229 = pneg %p228
    // Predicated region
    $region9: #{up_forward.1} parent=5 // pred_check
      _
    $region10: #{up_forward.1} parent=5 // pred_check_branch
      %231 = sbr.rel (%p228) target = $region12
    $region11: #{up_forward.1} parent=5 // pred_region
      %s232 = ssub.s32 %s14, 1
      // Predicated region
      $region13: #{up_forward.1} parent=11 // pred_check
        %p233 = pneg %p87
      $region14: #{up_forward.1} parent=11 // pred_check_branch
        %235 = sbr.rel (%p233) target = $region16
      $region15: #{up_forward.1} parent=11 // pred_region
        _
      $region16: #{up_forward.1} parent=11 // pred_fallthru
        _
      // Predicated region
      $region17: #{up_forward.1} parent=11 // pred_check
        %p236 = pneg %p108
      $region18: #{up_forward.1} parent=11 // pred_check_branch
        %238 = sbr.rel (%p236) target = $region20
      $region19: #{up_forward.1} parent=11 // pred_region
        _
      $region20: #{up_forward.1} parent=11 // pred_fallthru
        _
      // Predicated region
      $region21: #{up_forward.1} parent=11 // pred_check
        %p239 = pneg %p129
      $region22: #{up_forward.1} parent=11 // pred_check_branch
        %241 = sbr.rel (%p239) target = $region24
      $region23: #{up_forward.1} parent=11 // pred_region
        _
      $region24: #{up_forward.1} parent=11 // pred_fallthru
        _
      // Predicated region
      $region25: #{up_forward.1} parent=11 // pred_check
        %p242 = pneg %p150
      $region26: #{up_forward.1} parent=11 // pred_check_branch
        %244 = sbr.rel (%p242) target = $region28
      $region27: #{up_forward.1} parent=11 // pred_region
        _
      $region28: #{up_forward.1} parent=11 // pred_fallthru
        _
      // Predicated region
      $region29: #{up_forward.1} parent=11 // pred_check
        %p245 = pneg %p171
      $region30: #{up_forward.1} parent=11 // pred_check_branch
        %247 = sbr.rel (%p245) target = $region32
      $region31: #{up_forward.1} parent=11 // pred_region
        _
      $region32: #{up_forward.1} parent=11 // pred_fallthru
        _
      // Predicated region
      $region33: #{up_forward.1} parent=11 // pred_check
        %p248 = pneg %p192
      $region34: #{up_forward.1} parent=11 // pred_check_branch
        %250 = sbr.rel (%p248) target = $region36
      $region35: #{up_forward.1} parent=11 // pred_region
        _
      $region36: #{up_forward.1} parent=11 // pred_fallthru
        _
    $region12: #{up_forward.1} parent=5 // pred_fallthru
      _
    %p251 = scmp.lt.s32.totalorder %s14, 2
    // Predicated region
    $region37: #{up_forward.1} parent=5 // pred_check
      %p252 = pneg %p251
    $region38: #{up_forward.1} parent=5 // pred_check_branch
      %254 = sbr.rel (%p252) target = $region40
    $region39: #{up_forward.1} parent=5 // pred_region
      // Predicated region
      $region41: #{up_forward.1} parent=39 // pred_check
        %p255 = pneg %p34
      $region42: #{up_forward.1} parent=39 // pred_check_branch
        %257 = sbr.rel (%p255) target = $region44
      $region43: #{up_forward.1} parent=39 // pred_region
        %p258 = scmp.lt.s32.totalorder %s14, 1
        %s259 = scalar_select %p258, %s14, 1
        %s260 = smul.addr %s259, 2
        %s261 = scalar_lea.vmem %s0, %s260
      $region44: #{up_forward.1} parent=39 // pred_fallthru
        _
      // Predicated region
      $region45: #{up_forward.1} parent=39 // pred_check
        %p262 = pneg %p60
      $region46: #{up_forward.1} parent=39 // pred_check_branch
        %264 = sbr.rel (%p262) target = $region48
      $region47: #{up_forward.1} parent=39 // pred_region
        %p265 = scmp.lt.s32.totalorder %s14, 1
        %s266 = scalar_select %p265, %s14, 1
        %s267 = smul.addr %s266, 4
        %s268 = smul.addr %s267, 2
        %s269 = scalar_lea.vmem %s1, %s268
      $region48: #{up_forward.1} parent=39 // pred_fallthru
        _
    $region40: #{up_forward.1} parent=5 // pred_fallthru
      _
    %p270 = scmp.le.s32.totalorder 1, %s14
    %p271 = scmp.lt.s32.totalorder %s14, 3
    %p272 = pnand %p270, %p271
    %p273 = pneg %p272
    // Predicated region
    $region49: #{up_forward.1} parent=5 // pred_check
      _
    $region50: #{up_forward.1} parent=5 // pred_check_branch
      %275 = sbr.rel (%p272) target = $region52
    $region51: #{up_forward.1} parent=5 // pred_region
      %s276 = ssub.s32 %s14, 1
      %p277 = scmp.lt.s32.totalorder %s19, 1
      %s278 = scalar_select %p277, %s19, 1
      %s279 = smul.addr %s278, 2
      %s280 = scalar_lea.vmem %s0, %s279
      %p281 = pneg %p40
      %p282 = pneg %p37
      %p283 = scmp.lt.s32.totalorder %s19, 1
      %s284 = scalar_select %p283, %s19, 1
      %s285 = smul.addr %s284, 4
      %s286 = smul.addr %s285, 2
      %s287 = scalar_lea.vmem %s1, %s286
      %p288 = pneg %p66
      %p289 = pneg %p63
      %p290 = pneg %p87
      %p291 = pneg %p84
      %p292 = pneg %p108
      %p293 = pneg %p105
      %p294 = pneg %p129
      %p295 = pneg %p126
      %p296 = pneg %p150
      %p297 = pneg %p147
      %p298 = pneg %p171
      %p299 = pneg %p168
      %p300 = pneg %p192
      %p301 = pneg %p189
      %p302 = pneg %p218
      %p303 = pneg %p215
      %p304 = scmp.lt.s32.totalorder %s19, 1
      %s305 = scalar_select %p304, %s19, 1
      %s306 = smul.addr %s305, 3
      %s307 = smul.addr %s306, 4
      %s308 = scalar_lea.vmem %s8, %s307
      %p309 = scmp.lt.s32.totalorder %s19, 1
      %s310 = scalar_select %p309, %s19, 1
      %s311 = smul.addr %s310, 2
      %s312 = scalar_lea.vmem %s0, %s311
      %p313 = scmp.lt.s32.totalorder %s19, 1
      %s314 = scalar_select %p313, %s19, 1
      %s315 = smul.addr %s314, 4
      %s316 = smul.addr %s315, 2
      %s317 = scalar_lea.vmem %s1, %s316
      %p318 = scmp.lt.s32.totalorder %s19, 1
      %s319 = scalar_select %p318, %s19, 1
      %s320 = smul.addr %s319, 3
      %s321 = smul.addr %s320, 4
      %s322 = scalar_lea.vmem %s8, %s321
      %v324 = vld [vmem:[%s317] sm:$0xff]
      %v326 = vcombine.high %v324, %v324
      %v328 = vunpack.c.l.s4 1983009808
      %v329 = vunpack.c.0.s8 %v328
      %v330 = vlaneseq
      %v331 = vshrl.u32 %v330, 7
      %v332 = vsub.s32 %v329, %v331
      %v333 = vrot.slane %v324, %v332
      %v335 = vunpack.c.l.s4 1983009808
      %v336 = vunpack.c.0.s8 %v335
      %v337 = vlaneseq
      %v338 = vshrl.u32 %v337, 7
      %v339 = vsub.s32 %v336, %v338
      %v340 = vrot.slane %v326, %v339
      %343 = vst [vmem:[#allocation2] sm:$0x33] %v333
      %vm344 = vcmask 1041408
      %vm345 = vcmask 406532
      %vm346 = vmor %vm345, %vm344
      %347 = vst.msk [vmem:[#allocation2 + $0x8] sm:$0x33] %vm346, %v340
      %v348 = vld [vmem:[%s312] sm:$0x3]
      %v349 = vld [vmem:[%s2] sm:$0xff]
      %v350 = vld [vmem:[%s2 + $0x8] sm:$0xff]
      %v351 = vld [vmem:[%s2 + $0x10] sm:$0xff]
      %v352 = vld [vmem:[%s2 + $0x18] sm:$0xff]
      %v353 = vld [vmem:[%s2 + $0x20] sm:$0xff]
      %v354 = vld [vmem:[%s2 + $0x28] sm:$0xff]
      %v355 = vld [vmem:[%s2 + $0x30] sm:$0xff]
      %v356 = vld [vmem:[%s2 + $0x38] sm:$0xff]
      %v357 = vld [vmem:[%s2 + $0x40] sm:$0xff]
      %v358 = vld [vmem:[%s2 + $0x48] sm:$0xff]
      %v359 = vld [vmem:[%s2 + $0x50] sm:$0xff]
      %v360 = vld [vmem:[%s2 + $0x58] sm:$0xff]
      %v361 = vld [vmem:[%s2 + $0x60] sm:$0xff]
      %v362 = vld [vmem:[%s2 + $0x68] sm:$0xff]
      %v363 = vld [vmem:[%s2 + $0x70] sm:$0xff]
      %v364 = vld [vmem:[%s2 + $0x78] sm:$0xff]
      %v381 = vunpack.c.l.b16 %v349
      %v382 = vunpack.c.h.b16 %v349
      %v383 = vunpack.c.l.b16 %v350
      %v384 = vunpack.c.h.b16 %v350
      %v385 = vunpack.c.l.b16 %v351
      %v386 = vunpack.c.h.b16 %v351
      %v387 = vunpack.c.l.b16 %v352
      %v388 = vunpack.c.h.b16 %v352
      %v389 = vunpack.c.l.b16 %v353
      %v390 = vunpack.c.h.b16 %v353
      %v391 = vunpack.c.l.b16 %v354
      %v392 = vunpack.c.h.b16 %v354
      %v393 = vunpack.c.l.b16 %v355
      %v394 = vunpack.c.h.b16 %v355
      %v395 = vunpack.c.l.b16 %v356
      %v396 = vunpack.c.h.b16 %v356
      %v397 = vunpack.c.l.b16 %v357
      %v398 = vunpack.c.h.b16 %v357
      %v399 = vunpack.c.l.b16 %v358
      %v400 = vunpack.c.h.b16 %v358
      %v401 = vunpack.c.l.b16 %v359
      %v402 = vunpack.c.h.b16 %v359
      %v403 = vunpack.c.l.b16 %v360
      %v404 = vunpack.c.h.b16 %v360
      %v405 = vunpack.c.l.b16 %v361
      %v406 = vunpack.c.h.b16 %v361
      %v407 = vunpack.c.l.b16 %v362
      %v408 = vunpack.c.h.b16 %v362
      %v409 = vunpack.c.l.b16 %v363
      %v410 = vunpack.c.h.b16 %v363
      %v411 = vunpack.c.l.b16 %v364
      %v412 = vunpack.c.h.b16 %v364
      %v413 = vpack.c.b16 %v385, %v381
      %v414 = vpack.c.b16 %v386, %v382
      %v415 = vpack.c.b16 %v387, %v383
      %v416 = vpack.c.b16 %v388, %v384
      %v417 = vpack.c.b16 %v393, %v389
      %v418 = vpack.c.b16 %v394, %v390
      %v419 = vpack.c.b16 %v395, %v391
      %v420 = vpack.c.b16 %v396, %v392
      %v421 = vpack.c.b16 %v401, %v397
      %v422 = vpack.c.b16 %v402, %v398
      %v423 = vpack.c.b16 %v403, %v399
      %v424 = vpack.c.b16 %v404, %v400
      %v425 = vpack.c.b16 %v409, %v405
      %v426 = vpack.c.b16 %v410, %v406
      %v427 = vpack.c.b16 %v411, %v407
      %v428 = vpack.c.b16 %v412, %v408
      %vm445 = vcmask 523264
      %v447 = vsel %vm445, %v348, 0
      %449 = vmatprep.subr.bf16.mxu0 %v414
      %450 = vmatpush1.bf16.msra.mxu0 %v413
      %451 = vmatprep.subr.bf16.mxu0 %v418
      %452 = vmatpush1.bf16.msra.mxu0 %v417
      %453 = vmatprep.subr.bf16.mxu0 %v422
      %454 = vmatpush1.bf16.msra.mxu0 %v421
      %455 = vmatprep.subr.bf16.mxu0 %v426
      %456 = vmatpush1.bf16.msra.mxu0 %v425
      %457 = vmatprep.subr.bf16.mxu0 0
      %458 = vmatpush1.bf16.msra.mxu0 0
      %459 = vmatprep.subr.bf16.mxu0 0
      %460 = vmatpush1.bf16.msra.mxu0 0
      %461 = vmatprep.subr.bf16.mxu0 0
      %462 = vmatpush1.bf16.msra.mxu0 0
      %463 = vmatprep.subr.bf16.mxu0 0
      %464 = vmatpush1.bf16.msra.mxu0 0
      %465 = vmatprep.subr.bf16.mxu0 0
      %466 = vmatpush1.bf16.msra.mxu0 0
      %467 = vmatprep.subr.bf16.mxu0 0
      %468 = vmatpush1.bf16.msra.mxu0 0
      %469 = vmatprep.subr.bf16.mxu0 0
      %470 = vmatpush1.bf16.msra.mxu0 0
      %471 = vmatprep.subr.bf16.mxu0 0
      %472 = vmatpush1.bf16.msra.mxu0 0
      %473 = vmatprep.subr.bf16.mxu0 0
      %474 = vmatpush1.bf16.msra.mxu0 0
      %475 = vmatprep.subr.bf16.mxu0 0
      %476 = vmatpush1.bf16.msra.mxu0 0
      %477 = vmatprep.subr.bf16.mxu0 0
      %478 = vmatpush1.bf16.msra.mxu0 0
      %479 = vmatprep.subr.bf16.mxu0 0
      %480 = vmatpush1.bf16.msra.mxu0 0
      %481 = vmatprep.mubr.bf16.mxu0 0
      %482 = vmatmul.mubr.bf16.gmra.mrb[0].mxu0 %v447
      %v483 = vpop.f32.mrb[0].mxu0
      %v484 = vadd.f32 0.0, %v483
      %v485 = vpop.f32.mrb[0].mxu0
      %v486 = vadd.f32 0.0, %v485
      %v487 = vpop.f32.mrb[0].mxu0
      %v488 = vpop.f32.mrb[0].mxu0
      %489 = vdwg.mxu0
      %490 = vmatprep.subr.bf16.mxu0 %v416
      %491 = vmatpush1.bf16.msra.mxu0 %v415
      %492 = vmatprep.subr.bf16.mxu0 %v420
      %493 = vmatpush1.bf16.msra.mxu0 %v419
      %494 = vmatprep.subr.bf16.mxu0 %v424
      %495 = vmatpush1.bf16.msra.mxu0 %v423
      %496 = vmatprep.subr.bf16.mxu0 %v428
      %497 = vmatpush1.bf16.msra.mxu0 %v427
      %498 = vmatprep.subr.bf16.mxu0 0
      %499 = vmatpush1.bf16.msra.mxu0 0
      %500 = vmatprep.subr.bf16.mxu0 0
      %501 = vmatpush1.bf16.msra.mxu0 0
      %502 = vmatprep.subr.bf16.mxu0 0
      %503 = vmatpush1.bf16.msra.mxu0 0
      %504 = vmatprep.subr.bf16.mxu0 0
      %505 = vmatpush1.bf16.msra.mxu0 0
      %506 = vmatprep.subr.bf16.mxu0 0
      %507 = vmatpush1.bf16.msra.mxu0 0
      %508 = vmatprep.subr.bf16.mxu0 0
      %509 = vmatpush1.bf16.msra.mxu0 0
      %510 = vmatprep.subr.bf16.mxu0 0
      %511 = vmatpush1.bf16.msra.mxu0 0
      %512 = vmatprep.subr.bf16.mxu0 0
      %513 = vmatpush1.bf16.msra.mxu0 0
      %514 = vmatprep.subr.bf16.mxu0 0
      %515 = vmatpush1.bf16.msra.mxu0 0
      %516 = vmatprep.subr.bf16.mxu0 0
      %517 = vmatpush1.bf16.msra.mxu0 0
      %518 = vmatprep.subr.bf16.mxu0 0
      %519 = vmatpush1.bf16.msra.mxu0 0
      %520 = vmatprep.subr.bf16.mxu0 0
      %521 = vmatpush1.bf16.msra.mxu0 0
      %522 = vmatprep.mubr.bf16.mxu0 0
      %523 = vmatmul.mubr.bf16.gmra.mrb[0].mxu0 %v447
      %v524 = vpop.f32.mrb[0].mxu0
      %v525 = vadd.f32 0.0, %v524
      %v526 = vpop.f32.mrb[0].mxu0
      %v527 = vadd.f32 0.0, %v526
      %v528 = vpop.f32.mrb[0].mxu0
      %v529 = vpop.f32.mrb[0].mxu0
      %530 = vdwg.mxu0
      %v531 = vpack.c.bf16 %v484, %v484
      %v532 = vpack.c.bf16 %v486, %v486
      %v533 = vpack.c.bf16 %v525, %v525
      %v534 = vpack.c.bf16 %v527, %v527
      %v539 = vunpack.c.l.b16 %v531
      %v540 = vunpack.c.l.b16 %v532
      %v541 = vunpack.c.l.b16 %v533
      %v542 = vunpack.c.l.b16 %v534
      %v543 = vpack.c.b16 %v540, %v539
      %v544 = vpack.c.b16 %v542, %v541
      %v545 = vrot.slane %v543, 6
      %v546 = vrot.slane %v544, 6
      %549 = vst [vmem:[#allocation2] sm:$0xcc] %v545
      %vm550 = vcmask 1043458
      %vm551 = vcmask 408582
      %vm552 = vmor %vm551, %vm550
      %553 = vst.msk [vmem:[#allocation2 + $0x8] sm:$0xcc] %vm552, %v546
      %v554 = vld [vmem:[#allocation2] sm:$0xff]
      %v555 = vld [vmem:[#allocation2 + $0x8] sm:$0xf]
      %556 = vst [vmem:[#allocation3] sm:$0xff] %v554
      %557 = vst [vmem:[#allocation3 + $0x8] sm:$0xf] %v555
      %v558 = vld [vmem:[#allocation2] sm:$0xff]
      %v559 = vld [vmem:[#allocation2 + $0x8] sm:$0xff]
      %562 = vrot.lane.b32.xlu0 %v558, 127
      %v563 = vpop.permute.xlu0 %562
      %564 = vrot.lane.b32.xlu0 %v559, 127
      %v565 = vpop.permute.xlu0 %564
      %v566 = vrot.slane %v563, 4
      %v567 = vrot.slane %v565, 4
      %vm568 = vcmask 1043456
      %v569 = vsel %vm568, %v566, %v567
      %vm570 = vcmask 1039360
      %v571 = vsel %vm570, %v563, %v569
      %v572 = vsel %vm570, %v565, %v567
      %575 = vst [vmem:[#allocation3 + $0xc] sm:$0xff] %v571
      %576 = vst [vmem:[#allocation3 + $0x14] sm:$0xf] %v572
      %v577 = vld [vmem:[#allocation2] sm:$0xff]
      %v578 = vld [vmem:[#allocation2 + $0x8] sm:$0xff]
      %581 = vrot.lane.b32.xlu0 %v577, 126
      %v582 = vpop.permute.xlu0 %581
      %583 = vrot.lane.b32.xlu0 %v578, 126
      %v584 = vpop.permute.xlu0 %583
      %v585 = vrot.slane %v582, 4
      %v586 = vrot.slane %v584, 4
      %v587 = vsel %vm568, %v585, %v586
      %vm588 = vcmask 1031168
      %v589 = vsel %vm588, %v582, %v587
      %v590 = vsel %vm588, %v584, %v586
      %593 = vst [vmem:[#allocation3 + $0x18] sm:$0xff] %v589
      %594 = vst [vmem:[#allocation3 + $0x20] sm:$0xf] %v590
      %v595 = vld [vmem:[#allocation2] sm:$0xff]
      %v596 = vld [vmem:[#allocation2 + $0x8] sm:$0xff]
      %599 = vrot.lane.b32.xlu0 %v595, 104
      %v600 = vpop.permute.xlu0 %599
      %601 = vrot.lane.b32.xlu0 %v596, 104
      %v602 = vpop.permute.xlu0 %601
      %v603 = vrot.slane %v600, 4
      %v604 = vrot.slane %v602, 4
      %v605 = vsel %vm568, %v603, %v604
      %vm606 = vcmask 850944
      %v607 = vsel %vm606, %v600, %v605
      %v608 = vsel %vm606, %v602, %v604
      %611 = vst [vmem:[#allocation3 + $0x24] sm:$0xff] %v607
      %612 = vst [vmem:[#allocation3 + $0x2c] sm:$0xf] %v608
      %v613 = vld [vmem:[#allocation2] sm:$0xff]
      %v614 = vld [vmem:[#allocation2 + $0x8] sm:$0xff]
      %617 = vrot.lane.b32.xlu0 %v613, 103
      %v618 = vpop.permute.xlu0 %617
      %619 = vrot.lane.b32.xlu0 %v614, 103
      %v620 = vpop.permute.xlu0 %619
      %v621 = vrot.slane %v618, 4
      %v622 = vrot.slane %v620, 4
      %v623 = vsel %vm568, %v621, %v622
      %vm624 = vcmask 842752
      %v625 = vsel %vm624, %v618, %v623
      %v626 = vsel %vm624, %v620, %v622
      %629 = vst [vmem:[#allocation3 + $0x30] sm:$0xff] %v625
      %630 = vst [vmem:[#allocation3 + $0x38] sm:$0xf] %v626
      %v631 = vld [vmem:[#allocation2] sm:$0xff]
      %v632 = vld [vmem:[#allocation2 + $0x8] sm:$0xff]
      %635 = vrot.lane.b32.xlu0 %v631, 102
      %v636 = vpop.permute.xlu0 %635
      %637 = vrot.lane.b32.xlu0 %v632, 102
      %v638 = vpop.permute.xlu0 %637
      %v639 = vrot.slane %v636, 4
      %v640 = vrot.slane %v638, 4
      %v641 = vsel %vm568, %v639, %v640
      %vm642 = vcmask 834560
      %v643 = vsel %vm642, %v636, %v641
      %v644 = vsel %vm642, %v638, %v640
      %647 = vst [vmem:[#allocation3 + $0x3c] sm:$0xff] %v643
      %648 = vst [vmem:[#allocation3 + $0x44] sm:$0xf] %v644
      %v649 = vld [vmem:[#allocation2] sm:$0xff]
      %v650 = vld [vmem:[#allocation2 + $0x8] sm:$0xff]
      %653 = vrot.lane.b32.xlu0 %v649, 80
      %v654 = vpop.permute.xlu0 %653
      %655 = vrot.lane.b32.xlu0 %v650, 80
      %v656 = vpop.permute.xlu0 %655
      %v657 = vrot.slane %v654, 4
      %v658 = vrot.slane %v656, 4
      %v659 = vsel %vm568, %v657, %v658
      %vm660 = vcmask 654336
      %v661 = vsel %vm660, %v654, %v659
      %v662 = vsel %vm660, %v656, %v658
      %665 = vst [vmem:[#allocation3 + $0x48] sm:$0xff] %v661
      %666 = vst [vmem:[#allocation3 + $0x50] sm:$0xf] %v662
      %v667 = vld [vmem:[#allocation2] sm:$0xff]
      %v668 = vld [vmem:[#allocation2 + $0x8] sm:$0xff]
      %671 = vrot.lane.b32.xlu0 %v667, 79
      %v672 = vpop.permute.xlu0 %671
      %673 = vrot.lane.b32.xlu0 %v668, 79
      %v674 = vpop.permute.xlu0 %673
      %v675 = vrot.slane %v672, 4
      %v676 = vrot.slane %v674, 4
      %v677 = vsel %vm568, %v675, %v676
      %vm678 = vcmask 646144
      %v679 = vsel %vm678, %v672, %v677
      %v680 = vsel %vm678, %v674, %v676
      %683 = vst [vmem:[#allocation3 + $0x54] sm:$0xff] %v679
      %684 = vst [vmem:[#allocation3 + $0x5c] sm:$0xf] %v680
      %v685 = vld [vmem:[#allocation2] sm:$0xff]
      %v686 = vld [vmem:[#allocation2 + $0x8] sm:$0xff]
      %689 = vrot.lane.b32.xlu0 %v685, 78
      %v690 = vpop.permute.xlu0 %689
      %691 = vrot.lane.b32.xlu0 %v686, 78
      %v692 = vpop.permute.xlu0 %691
      %v693 = vrot.slane %v690, 4
      %v694 = vrot.slane %v692, 4
      %v695 = vsel %vm568, %v693, %v694
      %vm696 = vcmask 637952
      %v697 = vsel %vm696, %v690, %v695
      %v698 = vsel %vm696, %v692, %v694
      %701 = vst [vmem:[#allocation3 + $0x60] sm:$0xff] %v697
      %702 = vst [vmem:[#allocation3 + $0x68] sm:$0xf] %v698
      %v703 = vld [vmem:[%s4] sm:$0x3]
      %v704 = vld [vmem:[#allocation3] sm:$0xff]
      %v705 = vld [vmem:[#allocation3 + $0x8] sm:$0xf]
      %v706 = vld [vmem:[#allocation3 + $0xc] sm:$0xff]
      %v707 = vld [vmem:[#allocation3 + $0x14] sm:$0xf]
      %v708 = vld [vmem:[#allocation3 + $0x18] sm:$0xff]
      %v709 = vld [vmem:[#allocation3 + $0x20] sm:$0xf]
      %v710 = vld [vmem:[#allocation3 + $0x24] sm:$0xff]
      %v711 = vld [vmem:[#allocation3 + $0x2c] sm:$0xf]
      %v712 = vld [vmem:[#allocation3 + $0x30] sm:$0xff]
      %v713 = vld [vmem:[#allocation3 + $0x38] sm:$0xf]
      %v714 = vld [vmem:[#allocation3 + $0x3c] sm:$0xff]
      %v715 = vld [vmem:[#allocation3 + $0x44] sm:$0xf]
      %v716 = vld [vmem:[#allocation3 + $0x48] sm:$0xff]
      %v717 = vld [vmem:[#allocation3 + $0x50] sm:$0xf]
      %v718 = vld [vmem:[#allocation3 + $0x54] sm:$0xff]
      %v719 = vld [vmem:[#allocation3 + $0x5c] sm:$0xf]
      %v720 = vld [vmem:[#allocation3 + $0x60] sm:$0xff]
      %v721 = vld [vmem:[#allocation3 + $0x68] sm:$0xf]
      %v722 = vld [vmem:[%s5] sm:$0xf]
      %724 = vset.pattern.permute.xlu0 0
      %725 = vperm.xlu0 %724, %v722
      %v726 = vpop.permute.xlu0 %725
      %v746 = vunpack.c.l.b16 %v704
      %v747 = vunpack.c.h.b16 %v704
      %v748 = vunpack.c.l.b16 %v705
      %v749 = vunpack.c.l.b16 %v706
      %v750 = vunpack.c.h.b16 %v706
      %v751 = vunpack.c.l.b16 %v707
      %v752 = vunpack.c.l.b16 %v708
      %v753 = vunpack.c.h.b16 %v708
      %v754 = vunpack.c.l.b16 %v709
      %v755 = vunpack.c.l.b16 %v710
      %v756 = vunpack.c.h.b16 %v710
      %v757 = vunpack.c.l.b16 %v711
      %v758 = vunpack.c.l.b16 %v712
      %v759 = vunpack.c.h.b16 %v712
      %v760 = vunpack.c.l.b16 %v713
      %v761 = vunpack.c.l.b16 %v714
      %v762 = vunpack.c.h.b16 %v714
      %v763 = vunpack.c.l.b16 %v715
      %v764 = vunpack.c.l.b16 %v716
      %v765 = vunpack.c.h.b16 %v716
      %v766 = vunpack.c.l.b16 %v717
      %v767 = vunpack.c.l.b16 %v718
      %v768 = vunpack.c.h.b16 %v718
      %v769 = vunpack.c.l.b16 %v719
      %v770 = vunpack.c.l.b16 %v720
      %v771 = vunpack.c.h.b16 %v720
      %v772 = vunpack.c.l.b16 %v721
      %v773 = vpack.c.b16 %v749, %v746
      %v774 = vpack.c.b16 %v750, %v747
      %v775 = vpack.c.b16 %v751, %v748
      %v776 = vpack.c.b16 %v755, %v752
      %v777 = vpack.c.b16 %v756, %v753
      %v778 = vpack.c.b16 %v757, %v754
      %v779 = vpack.c.b16 %v761, %v758
      %v780 = vpack.c.b16 %v762, %v759
      %v781 = vpack.c.b16 %v763, %v760
      %v782 = vpack.c.b16 %v767, %v764
      %v783 = vpack.c.b16 %v768, %v765
      %v784 = vpack.c.b16 %v769, %v766
      %v785 = vpack.c.b16 %v770, %v770
      %v786 = vpack.c.b16 %v771, %v771
      %v787 = vpack.c.b16 %v772, %v772
      %vm800 = vcmask 588800
      %v802 = vsel %vm800, %v703, 0
      %vm804 = vcmask 1043456
      %v806 = vsel %vm804, %v785, 0
      %v809 = vsel %vm804, %v786, 0
      %v812 = vsel %vm804, %v787, 0
      %814 = vmatprep.subr.bf16.mxu0 %v774
      %815 = vmatpush1.bf16.msra.mxu0 %v773
      %816 = vmatprep.subr.bf16.mxu0 %v777
      %817 = vmatpush1.bf16.msra.mxu0 %v776
      %818 = vmatprep.subr.bf16.mxu0 %v780
      %819 = vmatpush1.bf16.msra.mxu0 %v779
      %820 = vmatprep.subr.bf16.mxu0 %v783
      %821 = vmatpush1.bf16.msra.mxu0 %v782
      %822 = vmatprep.subr.bf16.mxu0 %v809
      %823 = vmatpush1.bf16.msra.mxu0 %v806
      %824 = vmatprep.subr.bf16.mxu0 0
      %825 = vmatpush1.bf16.msra.mxu0 0
      %826 = vmatprep.subr.bf16.mxu0 0
      %827 = vmatpush1.bf16.msra.mxu0 0
      %828 = vmatprep.subr.bf16.mxu0 0
      %829 = vmatpush1.bf16.msra.mxu0 0
      %830 = vmatprep.subr.bf16.mxu0 0
      %831 = vmatpush1.bf16.msra.mxu0 0
      %832 = vmatprep.subr.bf16.mxu0 0
      %833 = vmatpush1.bf16.msra.mxu0 0
      %834 = vmatprep.subr.bf16.mxu0 0
      %835 = vmatpush1.bf16.msra.mxu0 0
      %836 = vmatprep.subr.bf16.mxu0 0
      %837 = vmatpush1.bf16.msra.mxu0 0
      %838 = vmatprep.subr.bf16.mxu0 0
      %839 = vmatpush1.bf16.msra.mxu0 0
      %840 = vmatprep.subr.bf16.mxu0 0
      %841 = vmatpush1.bf16.msra.mxu0 0
      %842 = vmatprep.subr.bf16.mxu0 0
      %843 = vmatpush1.bf16.msra.mxu0 0
      %844 = vmatprep.subr.bf16.mxu0 0
      %845 = vmatpush1.bf16.msra.mxu0 0
      %846 = vmatprep.mubr.bf16.mxu0 0
      %847 = vmatmul.mubr.bf16.gmra.mrb[0].mxu0 %v802
      %v848 = vpop.f32.mrb[0].mxu0
      %v849 = vadd.f32 %v726, %v848
      %v850 = vpop.f32.mrb[0].mxu0
      %v851 = vadd.f32 %v726, %v850
      %v852 = vpop.f32.mrb[0].mxu0
      %v853 = vpop.f32.mrb[0].mxu0
      %854 = vdwg.mxu0
      %855 = vmatprep.subr.bf16.mxu0 0
      %856 = vmatpush1.bf16.msra.mxu0 %v775
      %857 = vmatprep.subr.bf16.mxu0 0
      %858 = vmatpush1.bf16.msra.mxu0 %v778
      %859 = vmatprep.subr.bf16.mxu0 0
      %860 = vmatpush1.bf16.msra.mxu0 %v781
      %861 = vmatprep.subr.bf16.mxu0 0
      %862 = vmatpush1.bf16.msra.mxu0 %v784
      %863 = vmatprep.subr.bf16.mxu0 0
      %864 = vmatpush1.bf16.msra.mxu0 %v812
      %865 = vmatprep.subr.bf16.mxu0 0
      %866 = vmatpush1.bf16.msra.mxu0 0
      %867 = vmatprep.subr.bf16.mxu0 0
      %868 = vmatpush1.bf16.msra.mxu0 0
      %869 = vmatprep.subr.bf16.mxu0 0
      %870 = vmatpush1.bf16.msra.mxu0 0
      %871 = vmatprep.subr.bf16.mxu0 0
      %872 = vmatpush1.bf16.msra.mxu0 0
      %873 = vmatprep.subr.bf16.mxu0 0
      %874 = vmatpush1.bf16.msra.mxu0 0
      %875 = vmatprep.subr.bf16.mxu0 0
      %876 = vmatpush1.bf16.msra.mxu0 0
      %877 = vmatprep.subr.bf16.mxu0 0
      %878 = vmatpush1.bf16.msra.mxu0 0
      %879 = vmatprep.subr.bf16.mxu0 0
      %880 = vmatpush1.bf16.msra.mxu0 0
      %881 = vmatprep.subr.bf16.mxu0 0
      %882 = vmatpush1.bf16.msra.mxu0 0
      %883 = vmatprep.subr.bf16.mxu0 0
      %884 = vmatpush1.bf16.msra.mxu0 0
      %885 = vmatprep.subr.bf16.mxu0 0
      %886 = vmatpush1.bf16.msra.mxu0 0
      %887 = vmatprep.mubr.bf16.mxu0 0
      %888 = vmatmul.mubr.bf16.gmra.mrb[0].mxu0 %v802
      %v889 = vpop.f32.mrb[0].mxu0
      %v890 = vadd.f32 %v726, %v889
      %v891 = vpop.f32.mrb[0].mxu0
      %v892 = vpop.f32.mrb[0].mxu0
      %v893 = vpop.f32.mrb[0].mxu0
      %894 = vdwg.mxu0
      %v895 = vmax.f32 %v849, 0.0
      %v896 = vmax.f32 %v851, 0.0
      %v897 = vmax.f32 %v890, 0.0
      %v898 = vld [vmem:[%s3] sm:$0x7]
      %v900 = vlaneseq
      %v901 = vshrl.u32 %v900, 7
      %v902 = vsub.s32 0, %v901
      %v903 = vrot.slane %v898, %v902
      %v904 = vlaneseq
      %v905 = vshrl.u32 %v904, 7
      %v906 = vsub.s32 1, %v905
      %v907 = vrot.slane %v898, %v906
      %v908 = vlaneseq
      %v909 = vshrl.u32 %v908, 7
      %v910 = vsub.s32 2, %v909
      %v911 = vrot.slane %v898, %v910
      %v915 = vmul.f32 %v895, %v903
      %v916 = vmul.f32 %v896, %v907
      %v917 = vmul.f32 %v897, %v911
      %vm918 = vcmask 197632
      %919 = vst.msk [vmem:[#allocation4] sm:$0x3] %vm918, 0
      %vm920 = vcmask 402632
      %921 = vst.msk [vmem:[#allocation4 + $0x6] sm:$0x3] %vm920, 0
      %v922 = vpack.c.bf16 %v915, %v915
      %v923 = vpack.c.bf16 %v916, %v916
      %v924 = vpack.c.bf16 %v917, %v917
      %v928 = vcombine.low %v922, %v923
      %v930 = vunpack.c.l.s4 1983009808
      %v931 = vunpack.c.0.s8 %v930
      %v932 = vlaneseq
      %v933 = vshrl.u32 %v932, 7
      %v934 = vsub.s32 %v931, %v933
      %v935 = vrot.slane %v928, %v934
      %v937 = vunpack.c.l.s4 1983009808
      %v938 = vunpack.c.0.s8 %v937
      %v939 = vlaneseq
      %v940 = vshrl.u32 %v939, 7
      %v941 = vsub.s32 %v938, %v940
      %v942 = vrot.slane %v924, %v941
      %v943 = vcombine.low %v935, %v942
      %944 = vrot.lane.b32.xlu0 %v943, 25
      %v945 = vpop.permute.xlu0 %944
      %v946 = vrot.slane %v945, 6
      %vm947 = vcmask 203776
      %v948 = vsel %vm947, %v946, %v945
      %vm950 = vcmask 1041608
      %vm951 = vmor %vm550, %vm950
      %vm952 = vcmask 1045508
      %vm953 = vmor %vm952, %vm951
      %vm954 = vcmask 203782
      %vm955 = vmor %vm954, %vm953
      %956 = vst.msk [vmem:[#allocation4] sm:$0xff] %vm955, %v948
      %v957 = vld [vmem:[#allocation4] sm:$0x3f]
      %v959 = vcombine.high %v957, %v957
      %v961 = vunpack.c.l.s4 1983009808
      %v962 = vunpack.c.0.s8 %v961
      %v963 = vlaneseq
      %v964 = vshrl.u32 %v963, 7
      %v965 = vsub.s32 %v962, %v964
      %v966 = vrot.slane %v957, %v965
      %v968 = vunpack.c.l.s4 1983009808
      %v969 = vunpack.c.0.s8 %v968
      %v970 = vlaneseq
      %v971 = vshrl.u32 %v970, 7
      %v972 = vsub.s32 %v969, %v971
      %v973 = vrot.slane %v959, %v972
      %976 = vst [vmem:[#allocation5] sm:$0x33] %v966
      %977 = vst [vmem:[#allocation5 + $0x8] sm:$0x3] %v973
      %v978 = vld [vmem:[#allocation4] sm:$0xff]
      %v980 = vcombine.low %v978, %v978
      %v982 = vunpack.c.l.s4 1983009808
      %v983 = vunpack.c.0.s8 %v982
      %v984 = vlaneseq
      %v985 = vshrl.u32 %v984, 7
      %v986 = vsub.s32 %v983, %v985
      %v987 = vrot.slane %v980, %v986
      %v989 = vunpack.c.l.s4 1983009808
      %v990 = vunpack.c.0.s8 %v989
      %v991 = vlaneseq
      %v992 = vshrl.u32 %v991, 7
      %v993 = vsub.s32 %v990, %v992
      %v994 = vrot.slane %v978, %v993
      %995 = vrot.lane.b32.xlu0 %v987, 127
      %v996 = vpop.permute.xlu0 %995
      %997 = vrot.lane.b32.xlu0 %v994, 127
      %v998 = vpop.permute.xlu0 %997
      %v999 = vrot.slane %v996, 4
      %v1000 = vrot.slane %v998, 4
      %v1001 = vsel %vm568, %v999, %v1000
      %v1002 = vsel %vm570, %v996, %v1001
      %v1003 = vsel %vm570, %v998, %v1000
      %1006 = vst [vmem:[#allocation5] sm:$0xcc] %v1002
      %1007 = vst [vmem:[#allocation5 + $0x8] sm:$0xc] %v1003
      %v1008 = vld [vmem:[#allocation4] sm:$0xff]
      %v1010 = vcombine.high %v1008, %v1008
      %v1012 = vunpack.c.l.s4 1983009808
      %v1013 = vunpack.c.0.s8 %v1012
      %v1014 = vlaneseq
      %v1015 = vshrl.u32 %v1014, 7
      %v1016 = vsub.s32 %v1013, %v1015
      %v1017 = vrot.slane %v1008, %v1016
      %v1019 = vunpack.c.l.s4 1983009808
      %v1020 = vunpack.c.0.s8 %v1019
      %v1021 = vlaneseq
      %v1022 = vshrl.u32 %v1021, 7
      %v1023 = vsub.s32 %v1020, %v1022
      %v1024 = vrot.slane %v1010, %v1023
      %1025 = vrot.lane.b32.xlu0 %v1017, 126
      %v1026 = vpop.permute.xlu0 %1025
      %1027 = vrot.lane.b32.xlu0 %v1024, 126
      %v1028 = vpop.permute.xlu0 %1027
      %v1029 = vrot.slane %v1026, 4
      %v1030 = vrot.slane %v1028, 4
      %v1031 = vsel %vm568, %v1029, %v1030
      %v1032 = vsel %vm588, %v1026, %v1031
      %v1033 = vsel %vm588, %v1028, %v1030
      %1036 = vst [vmem:[#allocation5 + $0xc] sm:$0x33] %v1032
      %1037 = vst [vmem:[#allocation5 + $0x14] sm:$0x3] %v1033
      %v1038 = vld [vmem:[#allocation4] sm:$0xff]
      %v1040 = vcombine.low %v1038, %v1038
      %v1042 = vunpack.c.l.s4 1983009808
      %v1043 = vunpack.c.0.s8 %v1042
      %v1044 = vlaneseq
      %v1045 = vshrl.u32 %v1044, 7
      %v1046 = vsub.s32 %v1043, %v1045
      %v1047 = vrot.slane %v1040, %v1046
      %v1049 = vunpack.c.l.s4 1983009808
      %v1050 = vunpack.c.0.s8 %v1049
      %v1051 = vlaneseq
      %v1052 = vshrl.u32 %v1051, 7
      %v1053 = vsub.s32 %v1050, %v1052
      %v1054 = vrot.slane %v1038, %v1053
      %1055 = vrot.lane.b32.xlu0 %v1047, 104
      %v1056 = vpop.permute.xlu0 %1055
      %1057 = vrot.lane.b32.xlu0 %v1054, 104
      %v1058 = vpop.permute.xlu0 %1057
      %v1059 = vrot.slane %v1056, 4
      %v1060 = vrot.slane %v1058, 4
      %v1061 = vsel %vm568, %v1059, %v1060
      %v1062 = vsel %vm606, %v1056, %v1061
      %v1063 = vsel %vm606, %v1058, %v1060
      %1066 = vst [vmem:[#allocation5 + $0xc] sm:$0xcc] %v1062
      %1067 = vst [vmem:[#allocation5 + $0x14] sm:$0xc] %v1063
      %v1068 = vld [vmem:[#allocation4] sm:$0xff]
      %v1070 = vcombine.high %v1068, %v1068
      %v1072 = vunpack.c.l.s4 1983009808
      %v1073 = vunpack.c.0.s8 %v1072
      %v1074 = vlaneseq
      %v1075 = vshrl.u32 %v1074, 7
      %v1076 = vsub.s32 %v1073, %v1075
      %v1077 = vrot.slane %v1068, %v1076
      %v1079 = vunpack.c.l.s4 1983009808
      %v1080 = vunpack.c.0.s8 %v1079
      %v1081 = vlaneseq
      %v1082 = vshrl.u32 %v1081, 7
      %v1083 = vsub.s32 %v1080, %v1082
      %v1084 = vrot.slane %v1070, %v1083
      %1085 = vrot.lane.b32.xlu0 %v1077, 103
      %v1086 = vpop.permute.xlu0 %1085
      %1087 = vrot.lane.b32.xlu0 %v1084, 103
      %v1088 = vpop.permute.xlu0 %1087
      %v1089 = vrot.slane %v1086, 4
      %v1090 = vrot.slane %v1088, 4
      %v1091 = vsel %vm568, %v1089, %v1090
      %v1092 = vsel %vm624, %v1086, %v1091
      %v1093 = vsel %vm624, %v1088, %v1090
      %1096 = vst [vmem:[#allocation5 + $0x18] sm:$0x33] %v1092
      %1097 = vst [vmem:[#allocation5 + $0x20] sm:$0x3] %v1093
      %v1098 = vld [vmem:[#allocation4] sm:$0xff]
      %v1100 = vcombine.low %v1098, %v1098
      %v1102 = vunpack.c.l.s4 1983009808
      %v1103 = vunpack.c.0.s8 %v1102
      %v1104 = vlaneseq
      %v1105 = vshrl.u32 %v1104, 7
      %v1106 = vsub.s32 %v1103, %v1105
      %v1107 = vrot.slane %v1100, %v1106
      %v1109 = vunpack.c.l.s4 1983009808
      %v1110 = vunpack.c.0.s8 %v1109
      %v1111 = vlaneseq
      %v1112 = vshrl.u32 %v1111, 7
      %v1113 = vsub.s32 %v1110, %v1112
      %v1114 = vrot.slane %v1098, %v1113
      %1115 = vrot.lane.b32.xlu0 %v1107, 102
      %v1116 = vpop.permute.xlu0 %1115
      %1117 = vrot.lane.b32.xlu0 %v1114, 102
      %v1118 = vpop.permute.xlu0 %1117
      %v1119 = vrot.slane %v1116, 4
      %v1120 = vrot.slane %v1118, 4
      %v1121 = vsel %vm568, %v1119, %v1120
      %v1122 = vsel %vm642, %v1116, %v1121
      %v1123 = vsel %vm642, %v1118, %v1120
      %1126 = vst [vmem:[#allocation5 + $0x18] sm:$0xcc] %v1122
      %1127 = vst [vmem:[#allocation5 + $0x20] sm:$0xc] %v1123
      %v1128 = vld [vmem:[#allocation4] sm:$0xff]
      %v1130 = vcombine.high %v1128, %v1128
      %v1132 = vunpack.c.l.s4 1983009808
      %v1133 = vunpack.c.0.s8 %v1132
      %v1134 = vlaneseq
      %v1135 = vshrl.u32 %v1134, 7
      %v1136 = vsub.s32 %v1133, %v1135
      %v1137 = vrot.slane %v1128, %v1136
      %v1139 = vunpack.c.l.s4 1983009808
      %v1140 = vunpack.c.0.s8 %v1139
      %v1141 = vlaneseq
      %v1142 = vshrl.u32 %v1141, 7
      %v1143 = vsub.s32 %v1140, %v1142
      %v1144 = vrot.slane %v1130, %v1143
      %1145 = vrot.lane.b32.xlu0 %v1137, 80
      %v1146 = vpop.permute.xlu0 %1145
      %1147 = vrot.lane.b32.xlu0 %v1144, 80
      %v1148 = vpop.permute.xlu0 %1147
      %v1149 = vrot.slane %v1146, 4
      %v1150 = vrot.slane %v1148, 4
      %v1151 = vsel %vm568, %v1149, %v1150
      %v1152 = vsel %vm660, %v1146, %v1151
      %v1153 = vsel %vm660, %v1148, %v1150
      %1156 = vst [vmem:[#allocation5 + $0x24] sm:$0x33] %v1152
      %1157 = vst [vmem:[#allocation5 + $0x2c] sm:$0x3] %v1153
      %v1158 = vld [vmem:[#allocation4] sm:$0xff]
      %v1160 = vcombine.low %v1158, %v1158
      %v1162 = vunpack.c.l.s4 1983009808
      %v1163 = vunpack.c.0.s8 %v1162
      %v1164 = vlaneseq
      %v1165 = vshrl.u32 %v1164, 7
      %v1166 = vsub.s32 %v1163, %v1165
      %v1167 = vrot.slane %v1160, %v1166
      %v1169 = vunpack.c.l.s4 1983009808
      %v1170 = vunpack.c.0.s8 %v1169
      %v1171 = vlaneseq
      %v1172 = vshrl.u32 %v1171, 7
      %v1173 = vsub.s32 %v1170, %v1172
      %v1174 = vrot.slane %v1158, %v1173
      %1175 = vrot.lane.b32.xlu0 %v1167, 79
      %v1176 = vpop.permute.xlu0 %1175
      %1177 = vrot.lane.b32.xlu0 %v1174, 79
      %v1178 = vpop.permute.xlu0 %1177
      %v1179 = vrot.slane %v1176, 4
      %v1180 = vrot.slane %v1178, 4
      %v1181 = vsel %vm568, %v1179, %v1180
      %v1182 = vsel %vm678, %v1176, %v1181
      %v1183 = vsel %vm678, %v1178, %v1180
      %1186 = vst [vmem:[#allocation5 + $0x24] sm:$0xcc] %v1182
      %1187 = vst [vmem:[#allocation5 + $0x2c] sm:$0xc] %v1183
      %v1188 = vld [vmem:[#allocation4] sm:$0xff]
      %v1190 = vcombine.high %v1188, %v1188
      %v1192 = vunpack.c.l.s4 1983009808
      %v1193 = vunpack.c.0.s8 %v1192
      %v1194 = vlaneseq
      %v1195 = vshrl.u32 %v1194, 7
      %v1196 = vsub.s32 %v1193, %v1195
      %v1197 = vrot.slane %v1188, %v1196
      %v1199 = vunpack.c.l.s4 1983009808
      %v1200 = vunpack.c.0.s8 %v1199
      %v1201 = vlaneseq
      %v1202 = vshrl.u32 %v1201, 7
      %v1203 = vsub.s32 %v1200, %v1202
      %v1204 = vrot.slane %v1190, %v1203
      %1205 = vrot.lane.b32.xlu0 %v1197, 78
      %v1206 = vpop.permute.xlu0 %1205
      %1207 = vrot.lane.b32.xlu0 %v1204, 78
      %v1208 = vpop.permute.xlu0 %1207
      %v1209 = vrot.slane %v1206, 4
      %v1210 = vrot.slane %v1208, 4
      %v1211 = vsel %vm568, %v1209, %v1210
      %v1212 = vsel %vm696, %v1206, %v1211
      %v1213 = vsel %vm696, %v1208, %v1210
      %1216 = vst [vmem:[#allocation5 + $0x30] sm:$0x33] %v1212
      %1217 = vst [vmem:[#allocation5 + $0x38] sm:$0x3] %v1213
      %v1218 = vld [vmem:[%s6] sm:$0x3]
      %v1219 = vld [vmem:[#allocation5] sm:$0xff]
      %v1220 = vld [vmem:[#allocation5 + $0x8] sm:$0xf]
      %v1221 = vld [vmem:[#allocation5 + $0xc] sm:$0xff]
      %v1222 = vld [vmem:[#allocation5 + $0x14] sm:$0xf]
      %v1223 = vld [vmem:[#allocation5 + $0x18] sm:$0xff]
      %v1224 = vld [vmem:[#allocation5 + $0x20] sm:$0xf]
      %v1225 = vld [vmem:[#allocation5 + $0x24] sm:$0xff]
      %v1226 = vld [vmem:[#allocation5 + $0x2c] sm:$0xf]
      %v1227 = vld [vmem:[#allocation5 + $0x30] sm:$0x33]
      %v1228 = vld [vmem:[#allocation5 + $0x38] sm:$0x3]
      %v1229 = vld [vmem:[%s7] sm:$0xf]
      %1231 = vset.pattern.permute.xlu0 0
      %1232 = vperm.xlu0 %1231, %v1229
      %v1233 = vpop.permute.xlu0 %1232
      %v1245 = vunpack.c.l.b16 %v1219
      %v1246 = vunpack.c.h.b16 %v1219
      %v1247 = vunpack.c.l.b16 %v1220
      %v1248 = vunpack.c.l.b16 %v1221
      %v1249 = vunpack.c.h.b16 %v1221
      %v1250 = vunpack.c.l.b16 %v1222
      %v1251 = vunpack.c.l.b16 %v1223
      %v1252 = vunpack.c.h.b16 %v1223
      %v1253 = vunpack.c.l.b16 %v1224
      %v1254 = vunpack.c.l.b16 %v1225
      %v1255 = vunpack.c.h.b16 %v1225
      %v1256 = vunpack.c.l.b16 %v1226
      %v1257 = vunpack.c.l.b16 %v1227
      %v1258 = vunpack.c.h.b16 %v1227
      %v1259 = vunpack.c.l.b16 %v1228
      %v1260 = vpack.c.b16 %v1248, %v1245
      %v1261 = vpack.c.b16 %v1249, %v1246
      %v1262 = vpack.c.b16 %v1250, %v1247
      %v1263 = vpack.c.b16 %v1254, %v1251
      %v1264 = vpack.c.b16 %v1255, %v1252
      %v1265 = vpack.c.b16 %v1256, %v1253
      %v1266 = vpack.c.b16 %v1257, %v1257
      %v1267 = vpack.c.b16 %v1258, %v1258
      %v1268 = vpack.c.b16 %v1259, %v1259
      %vm1275 = vcmask 293888
      %v1277 = vsel %vm1275, %v1218, 0
      %v1280 = vsel %vm344, %v1266, 0
      %v1283 = vsel %vm344, %v1267, 0
      %v1286 = vsel %vm344, %v1268, 0
      %1288 = vmatprep.subr.bf16.mxu0 %v1261
      %1289 = vmatpush1.bf16.msra.mxu0 %v1260
      %1290 = vmatprep.subr.bf16.mxu0 %v1264
      %1291 = vmatpush1.bf16.msra.mxu0 %v1263
      %1292 = vmatprep.subr.bf16.mxu0 %v1283
      %1293 = vmatpush1.bf16.msra.mxu0 %v1280
      %1294 = vmatprep.subr.bf16.mxu0 0
      %1295 = vmatpush1.bf16.msra.mxu0 0
      %1296 = vmatprep.subr.bf16.mxu0 0
      %1297 = vmatpush1.bf16.msra.mxu0 0
      %1298 = vmatprep.subr.bf16.mxu0 0
      %1299 = vmatpush1.bf16.msra.mxu0 0
      %1300 = vmatprep.subr.bf16.mxu0 0
      %1301 = vmatpush1.bf16.msra.mxu0 0
      %1302 = vmatprep.subr.bf16.mxu0 0
      %1303 = vmatpush1.bf16.msra.mxu0 0
      %1304 = vmatprep.subr.bf16.mxu0 0
      %1305 = vmatpush1.bf16.msra.mxu0 0
      %1306 = vmatprep.subr.bf16.mxu0 0
      %1307 = vmatpush1.bf16.msra.mxu0 0
      %1308 = vmatprep.subr.bf16.mxu0 0
      %1309 = vmatpush1.bf16.msra.mxu0 0
      %1310 = vmatprep.subr.bf16.mxu0 0
      %1311 = vmatpush1.bf16.msra.mxu0 0
      %1312 = vmatprep.subr.bf16.mxu0 0
      %1313 = vmatpush1.bf16.msra.mxu0 0
      %1314 = vmatprep.subr.bf16.mxu0 0
      %1315 = vmatpush1.bf16.msra.mxu0 0
      %1316 = vmatprep.subr.bf16.mxu0 0
      %1317 = vmatpush1.bf16.msra.mxu0 0
      %1318 = vmatprep.subr.bf16.mxu0 0
      %1319 = vmatpush1.bf16.msra.mxu0 0
      %1320 = vmatprep.mubr.bf16.mxu0 0
      %1321 = vmatmul.mubr.bf16.gmra.mrb[0].mxu0 %v1277
      %v1322 = vpop.f32.mrb[0].mxu0
      %v1323 = vadd.f32 %v1233, %v1322
      %v1324 = vpop.f32.mrb[0].mxu0
      %v1325 = vadd.f32 %v1233, %v1324
      %v1326 = vpop.f32.mrb[0].mxu0
      %v1327 = vpop.f32.mrb[0].mxu0
      %1328 = vdwg.mxu0
      %1329 = vmatprep.subr.bf16.mxu0 0
      %1330 = vmatpush1.bf16.msra.mxu0 %v1262
      %1331 = vmatprep.subr.bf16.mxu0 0
      %1332 = vmatpush1.bf16.msra.mxu0 %v1265
      %1333 = vmatprep.subr.bf16.mxu0 0
      %1334 = vmatpush1.bf16.msra.mxu0 %v1286
      %1335 = vmatprep.subr.bf16.mxu0 0
      %1336 = vmatpush1.bf16.msra.mxu0 0
      %1337 = vmatprep.subr.bf16.mxu0 0
      %1338 = vmatpush1.bf16.msra.mxu0 0
      %1339 = vmatprep.subr.bf16.mxu0 0
      %1340 = vmatpush1.bf16.msra.mxu0 0
      %1341 = vmatprep.subr.bf16.mxu0 0
      %1342 = vmatpush1.bf16.msra.mxu0 0
      %1343 = vmatprep.subr.bf16.mxu0 0
      %1344 = vmatpush1.bf16.msra.mxu0 0
      %1345 = vmatprep.subr.bf16.mxu0 0
      %1346 = vmatpush1.bf16.msra.mxu0 0
      %1347 = vmatprep.subr.bf16.mxu0 0
      %1348 = vmatpush1.bf16.msra.mxu0 0
      %1349 = vmatprep.subr.bf16.mxu0 0
      %1350 = vmatpush1.bf16.msra.mxu0 0
      %1351 = vmatprep.subr.bf16.mxu0 0
      %1352 = vmatpush1.bf16.msra.mxu0 0
      %1353 = vmatprep.subr.bf16.mxu0 0
      %1354 = vmatpush1.bf16.msra.mxu0 0
      %1355 = vmatprep.subr.bf16.mxu0 0
      %1356 = vmatpush1.bf16.msra.mxu0 0
      %1357 = vmatprep.subr.bf16.mxu0 0
      %1358 = vmatpush1.bf16.msra.mxu0 0
      %1359 = vmatprep.subr.bf16.mxu0 0
      %1360 = vmatpush1.bf16.msra.mxu0 0
      %1361 = vmatprep.mubr.bf16.mxu0 0
      %1362 = vmatmul.mubr.bf16.gmra.mrb[0].mxu0 %v1277
      %v1363 = vpop.f32.mrb[0].mxu0
      %v1364 = vadd.f32 %v1233, %v1363
      %v1365 = vpop.f32.mrb[0].mxu0
      %v1366 = vpop.f32.mrb[0].mxu0
      %v1367 = vpop.f32.mrb[0].mxu0
      %1368 = vdwg.mxu0
      %v1369 = vmax.f32 %v1323, 0.0
      %v1370 = vmax.f32 %v1325, 0.0
      %v1371 = vmax.f32 %v1364, 0.0
      %v1374 = vcombine.low %v1369, %v1370
      %1376 = vst [vmem:[%s322] sm:$0xff] %v1374
      %1377 = vst [vmem:[%s322 + $0x8] sm:$0xf] %v1371
      %p1378 = scmp.lt.s32.totalorder %s19, 1
      %s1379 = scalar_select %p1378, %s19, 1
      %s1380 = smul.addr %s1379, 3
      %s1381 = smul.addr %s1380, 4
      %s1382 = scalar_lea.vmem %s8, %s1381
      // Predicated region
      $region53: #{up_forward.1} parent=51 // pred_check
        %p1383 = pneg %p215
      $region54: #{up_forward.1} parent=51 // pred_check_branch
        %1385 = sbr.rel (%p1383) target = $region56
      $region55: #{up_forward.1} parent=51 // pred_region
        _
      $region56: #{up_forward.1} parent=51 // pred_fallthru
        _
    $region52: #{up_forward.1} parent=5 // pred_fallthru
      _
    %p1386 = scmp.le.s32.totalorder 2, %s14
    // Predicated region
    $region57: #{up_forward.1} parent=5 // pred_check
      %p1387 = pneg %p1386
    $region58: #{up_forward.1} parent=5 // pred_check_branch
      %1389 = sbr.rel (%p1387) target = $region60
    $region59: #{up_forward.1} parent=5 // pred_region
      %s1390 = ssub.s32 %s14, 2
      // Predicated region
      $region61: #{up_forward.1} parent=59 // pred_check
        %p1391 = pneg %p221
      $region62: #{up_forward.1} parent=59 // pred_check_branch
        %1393 = sbr.rel (%p1391) target = $region64
      $region63: #{up_forward.1} parent=59 // pred_region
        %p1394 = scmp.lt.s32.totalorder %s20, 1
        %s1395 = scalar_select %p1394, %s20, 1
        %s1396 = smul.addr %s1395, 3
        %s1397 = smul.addr %s1396, 4
        %s1398 = scalar_lea.vmem %s8, %s1397
      $region64: #{up_forward.1} parent=59 // pred_fallthru
        _
    $region60: #{up_forward.1} parent=5 // pred_fallthru
      _
  $region6: #{up_forward.1} parent=0 // loop_footer
    %s18 = sadd.s32 1, %s14
  $region7: #{up_forward.1} parent=0 // loop_footer_branch
    %13 = sbr.rel target = $region3
  $region8: #{up_forward.1} parent=0 // loop_exit
    _

</llo_original>
